<compile_context>
chip_gen: v7x
topology: tpu7x:2x2x1
jax: 0.10.0
libtpu: 0.0.40
codegen_flags: <defaults>
</compile_context>

<pallas_src>
import math

import jax
import jax.numpy as jnp
from jax import lax
from jax.experimental import pallas as pl
from jax.experimental.pallas import tpu as pltpu


def _ceil8(n):
    return ((n + 7) // 8) * 8


def _ceil128(n):
    return ((n + 127) // 128) * 128


# ----------------------------------------------------------------------------
# Deterministic parameter construction (mirrors BackboneV1.__init__ shapes)
# ----------------------------------------------------------------------------
def _bn_params(c):
    return dict(
        gamma=jnp.ones((c,), jnp.float32),
        beta=jnp.zeros((c,), jnp.float32),
        mean=jnp.zeros((c,), jnp.float32),
        var=jnp.ones((c,), jnp.float32),
    )


def _bn_affine(bn, eps=1e-5):
    scale = bn["gamma"] / jnp.sqrt(bn["var"] + eps)
    shift = bn["beta"] - bn["mean"] * scale
    return scale, shift


def init_params(key, in_channels, n_assets, n_blocks, n_block_layers,
                growth_rate, channel_reduction):
    keys = iter(jax.random.split(key, 256))

    def conv_w(c_out, c_in, k):
        # matches: m.weight.data.normal_(0, sqrt(1 / (kernel_size * out_channels)))
        std = math.sqrt(1.0 / (k * c_out))
        return jax.random.normal(next(keys), (c_out, c_in, k), jnp.float32) * std

    params = {}
    c = 4 * growth_rate
    params["first_conv"] = conv_w(c, in_channels, 3)

    blocks = []
    for bidx in range(n_blocks):
        use_transition = bidx != n_blocks - 1
        layers = []
        cc = c
        for _ in range(n_block_layers):
            layers.append(dict(bn=_bn_params(cc), conv=conv_w(growth_rate, cc, 3)))
            cc += growth_rate
        blk = dict(layers=layers)
        if use_transition:
            t_out = int(math.floor(cc * channel_reduction))
            blk["transition"] = dict(bn=_bn_params(cc), conv=conv_w(t_out, cc, 1))
            cc = t_out
        blocks.append(blk)
        c = cc
    params["blocks"] = blocks

    params["final_bn"] = _bn_params(c)
    params["embed"] = jax.random.normal(next(keys), (n_assets, c), jnp.float32)
    params["fc_w"] = jax.random.normal(next(keys), (c, 2), jnp.float32) * math.sqrt(1.0 / c)
    params["fc_b"] = jnp.zeros((2,), jnp.float32)  # Linear bias zeroed as in the init loop
    return params


# ----------------------------------------------------------------------------
# Fused kernel body (built once per plan, unrolled over the static layer list)
# ----------------------------------------------------------------------------
def _build_kernel(plan):
    f32, bf16 = jnp.float32, jnp.bfloat16
    steps = plan["steps"]
    stage_L = plan["stage_L"]
    bl_pad = plan["bl_pad"]
    n_pool = plan["n_pool"]
    head_stage = plan["head_stage"]
    head_rows = plan["head_rows"]
    head_bn = plan["head_bn"]

    def kernel(x_ref, bnsc_ref, bnsh_ref, wslab_ref, wfcT_ref, fcb_ref,
               gap_ref, embT_ref, *rest):
        pool_refs = rest[:n_pool]
        out_ref = rest[n_pool]
        abufs = rest[n_pool + 1:]          # ping-pong activation scratch (f32)

        bnsc = bnsc_ref[...]
        bnsh = bnsh_ref[...]

        def buf(stage):
            return abufs[stage % len(abufs)]

        # Per-stage conv-halo boundary masks, (1, BL): zero the lane that would receive a
        # cross-sample (== Conv1d padding=1 zero) contribution.  Batch rides the lane axis,
        # so l % L == 0 / L-1 marks each sample's first / last position; padded lanes are
        # garbage but never leak into real lanes.
        mask_cache = {}

        def halo_masks(stage):
            if stage not in mask_cache:
                bl, Ls = bl_pad[stage], stage_L[stage]
                lane = lax.broadcasted_iota(jnp.int32, (1, bl), 1)
                mr = (lane % Ls != 0).astype(f32)        # gates the shift-right (l-1) tap
                ml = (lane % Ls != Ls - 1).astype(f32)   # gates the shift-left  (l+1) tap
                mask_cache[stage] = (mr, ml)
            return mask_cache[stage]

        def bn_relu(stage, rows, bn_idx):
            raw = buf(stage)[0:rows, 0:bl_pad[stage]]     # f32 (rows, BL)
            return jnp.maximum(raw * bnsc[0:rows, bn_idx:bn_idx + 1]
                               + bnsh[0:rows, bn_idx:bn_idx + 1], 0.0)

        for st in steps:
            s = st["stage"]
            bl = bl_pad[s]
            # static slice of the single bf16 weight slab
            W = wslab_ref[st["w_off"]:st["w_off"] + st["w_rows"], 0:st["w_cols"]]
            if st["kind"] == "conv3":
                if st["src"] == "x":
                    xin = x_ref[...]                                  # bf16 (cin_pad, BL0)
                else:
                    xin = bn_relu(s, st["rows"], st["bn"]).astype(bf16)
                op = st["o_pad"]
                # ONE matmul: the 3 taps stacked along the output-row axis
                y = jnp.dot(W, xin, preferred_element_type=f32)       # (3*op, BL)
                mr, ml = halo_masks(s)
                out = (y[op:2 * op, :]
                       + pltpu.roll(y[0:op, :], shift=1, axis=1) * mr
                       + pltpu.roll(y[2 * op:3 * op, :], shift=bl - 1, axis=1) * ml)
                # DenseNet concat == write the new chunk into the next sublane rows
                buf(s)[st["dst"]:st["dst"] + op, 0:bl] = out
            else:  # transition: BN -> ReLU -> Conv1x1 -> AvgPool(2) via a small bf16 matmul
                s2 = st["dst_stage"]
                xin = bn_relu(s, st["rows"], st["bn"]).astype(bf16)
                y = jnp.dot(W, xin, preferred_element_type=f32)       # (tp, BL)
                pooled = jnp.dot(y.astype(bf16), pool_refs[st["pool"]][...],
                                 preferred_element_type=f32)          # (tp, BL/2 padded)
                buf(s2)[0:st["o_pad"], 0:bl_pad[s2]] = pooled

        # head: BN -> ReLU -> global average pool -> FC + <pooled, embed(id)> -> sigmoid
        xh = bn_relu(head_stage, head_rows, head_bn)                  # f32 (rows, BL)
        pooled = jnp.dot(xh.astype(bf16), gap_ref[...],
                         preferred_element_type=f32)                  # (rows, B)
        logits = jnp.dot(wfcT_ref[...], pooled.astype(bf16),
                         preferred_element_type=f32)                  # (2, B)
        # (out * embed(id)).sum(-1, keepdim=True) broadcasts into BOTH prediction columns,
        # matching the PyTorch (B,2) + (B,1) broadcast.
        dotv = jnp.sum(pooled * embT_ref[...], axis=0, keepdims=True)  # (1, B)
        preds = logits + fcb_ref[...] + dotv                          # (2, B)
        row = lax.broadcasted_iota(jnp.int32, preds.shape, 0)
        out_ref[...] = jnp.where(row == 0, preds, 1.0 / (1.0 + jnp.exp(-preds)))

    return kernel


# ----------------------------------------------------------------------------
# One-time host-side prepack: static plan + all packed operands
# ----------------------------------------------------------------------------
def prepack(params, in_channels, B, L):
    f32, bf16 = jnp.float32, jnp.bfloat16

    def scatter_cols(w2d, chunks):
        # split the "actual" channel axis per chunk and zero-pad each chunk to its padded
        # width, matching the 8-aligned VMEM activation layout.
        pieces, col = [], 0
        for a, p in chunks:
            pieces.append(w2d[:, col:col + a])
            if p > a:
                pieces.append(jnp.zeros((w2d.shape[0], p - a), w2d.dtype))
            col += a
        return pieces[0] if len(pieces) == 1 else jnp.concatenate(pieces, axis=1)

    def scatter_vec(v, chunks):
        pieces, i = [], 0
        for a, p in chunks:
            pieces.append(v[i:i + a])
            if p > a:
                pieces.append(jnp.zeros((p - a,), v.dtype))
            i += a
        return pieces[0] if len(pieces) == 1 else jnp.concatenate(pieces)

    conv_ws, bn_scales, bn_shifts, steps = [], [], [], []
    stage_L, stage_rows = [], []
    cur_L, cur_stage, n_trans = L, 0, 0

    # first conv: no pre-norm/act; input x is a single chunk padded to 8 channels.
    in_chunks = [(in_channels, _ceil8(in_channels))]
    w = params["first_conv"]                               # (C0, C_in, 3)
    C0, C0p = w.shape[0], _ceil8(w.shape[0])
    taps = [jnp.pad(scatter_cols(w[:, :, k], in_chunks), ((0, C0p - C0), (0, 0)))
            for k in range(3)]
    conv_ws.append(jnp.concatenate(taps, axis=0))          # (3*C0p, cin_pad)
    steps.append(dict(kind="conv3", src="x", stage=0, rows=None, bn=None,
                      w=0, o_pad=C0p, dst=0))
    chunks = [(C0, C0p)]

    for blk in params["blocks"]:
        for layer in blk["layers"]:
            c_pad = sum(p for _, p in chunks)
            sc, sh = _bn_affine(layer["bn"])
            bn_scales.append(scatter_vec(sc, chunks))
            bn_shifts.append(scatter_vec(sh, chunks))
            w = layer["conv"]                              # (g, c_actual, 3)
            g, gp = w.shape[0], _ceil8(w.shape[0])
            taps = [jnp.pad(scatter_cols(w[:, :, k], chunks), ((0, gp - g), (0, 0)))
                    for k in range(3)]
            conv_ws.append(jnp.concatenate(taps, axis=0))  # (3*gp, c_pad)
            steps.append(dict(kind="conv3", src="A", stage=cur_stage, rows=c_pad,
                              bn=len(bn_scales) - 1, w=len(conv_ws) - 1,
                              o_pad=gp, dst=c_pad))
            chunks = chunks + [(g, gp)]
        if "transition" in blk:
            assert cur_L % 2 == 0, "AvgPool(2) transition assumes an even length"
            c_pad = sum(p for _, p in chunks)
            sc, sh = _bn_affine(blk["transition"]["bn"])
            bn_scales.append(scatter_vec(sc, chunks))
            bn_shifts.append(scatter_vec(sh, chunks))
            w = blk["transition"]["conv"][:, :, 0]         # (t_out, c_actual)
            t, tp = w.shape[0], _ceil8(w.shape[0])
            conv_ws.append(jnp.pad(scatter_cols(w, chunks), ((0, tp - t), (0, 0))))
            steps.append(dict(kind="trans", stage=cur_stage, rows=c_pad,
                              bn=len(bn_scales) - 1, w=len(conv_ws) - 1,
                              o_pad=tp, dst_stage=cur_stage + 1, pool=n_trans))
            stage_L.append(cur_L)
            stage_rows.append(c_pad)
            cur_stage += 1
            n_trans += 1
            cur_L //= 2
            chunks = [(t, tp)]

    head_rows = sum(p for _, p in chunks)
    stage_L.append(cur_L)
    stage_rows.append(head_rows)

    sc, sh = _bn_affine(params["final_bn"])
    bn_scales.append(scatter_vec(sc, chunks))
    bn_shifts.append(scatter_vec(sh, chunks))
    head_bn = len(bn_scales) - 1
    head_stage = cur_stage

    n_stage = len(stage_L)
    C_MAX = max(stage_rows)
    bl_pad = [_ceil128(B * l) for l in stage_L]            # lane-dense: multiples of 128

    # ---- one bf16 weight slab: rows concatenated, columns padded to a common lane width
    slab_cols = _ceil128(max(int(wi.shape[1]) for wi in conv_ws))
    w_offs, off, slab_parts = [], 0, []
    for wi in conv_ws:
        w_offs.append(off)
        off += int(wi.shape[0])
        slab_parts.append(jnp.pad(wi, ((0, 0), (0, slab_cols - int(wi.shape[1])))))
    wslab = jnp.concatenate(slab_parts, axis=0).astype(bf16)
    for st in steps:
        wi = st["w"]
        st["w_off"] = w_offs[wi]
        st["w_rows"] = int(conv_ws[wi].shape[0])
        st["w_cols"] = int(conv_ws[wi].shape[1])

    # ---- folded BN affines, stacked as columns (one lane per BN layer)
    bn_scale = jnp.stack([jnp.pad(v, (0, C_MAX - v.shape[0])) for v in bn_scales], axis=1)
    bn_shift = jnp.stack([jnp.pad(v, (0, C_MAX - v.shape[0])) for v in bn_shifts], axis=1)

    # ---- AvgPool(2) matrices (exact in bf16) per transition, packed-lane aware:
    #      input lane i = b*L + l maps to output lane i//2; padded lanes map nowhere.
    pools = []
    for st in steps:
        if st["kind"] != "trans":
            continue
        s, s2 = st["stage"], st["dst_stage"]
        ii = jnp.arange(bl_pad[s])[:, None]
        jj = jnp.arange(bl_pad[s2])[None, :]
        pools.append(jnp.where((ii // 2 == jj) & (ii < B * stage_L[s]),
                               0.5, 0.0).astype(bf16))

    # ---- global-average-pool matrix (exact in bf16 for power-of-two L)
    ii = jnp.arange(bl_pad[head_stage])[:, None]
    bb = jnp.arange(B)[None, :]
    gap = jnp.where((ii // stage_L[head_stage] == bb) & (ii < B * stage_L[head_stage]),
                    1.0 / stage_L[head_stage], 0.0).astype(bf16)

    # ---- head: FC weights / embedding table scattered into the padded channel layout
    wfcT = scatter_cols(params["fc_w"].T, chunks).astype(bf16)       # (2, head_rows)
    emb_packed = scatter_cols(params["embed"], chunks).astype(f32)   # (n_assets, head_rows)
    fcb = params["fc_b"].reshape(2, 1).astype(f32)

    plan = dict(steps=steps, stage_L=stage_L, stage_rows=stage_rows, bl_pad=bl_pad,
                n_stage=n_stage, n_pool=n_trans, head_stage=head_stage,
                head_rows=head_rows, head_bn=head_bn,
                cin_pad=_ceil8(in_channels), B=B, L=L, c_max=C_MAX)
    plan["kernel"] = _build_kernel(plan)

    packed = dict(wslab=wslab, bn_scale=bn_scale, bn_shift=bn_shift, wfcT=wfcT,
                  fc_b=fcb, gap=gap, pools=pools, emb_packed=emb_packed)
    return plan, packed


# ----------------------------------------------------------------------------
# Per-call forward: only x packing + embed gather on the host, then one pallas_call
# ----------------------------------------------------------------------------
def backbone_forward(plan, packed, x, ids):
    f32, bf16 = jnp.float32, jnp.bfloat16
    B, C_in, L = x.shape
    assert (B, L) == (plan["B"], plan["L"]) and _ceil8(C_in) == plan["cin_pad"]

    # input packed as (channels, B*L): batch rides the lane axis, padded to 128 lanes.
    x2d = jnp.transpose(x, (1, 0, 2)).reshape(C_in, B * L)
    x2d = jnp.pad(x2d, ((0, plan["cin_pad"] - C_in),
                        (0, plan["bl_pad"][0] - B * L))).astype(bf16)
    embT = packed["emb_packed"][ids].T                               # (head_rows, B) f32

    n_buf = min(2, plan["n_stage"])
    max_rows = max(plan["stage_rows"])
    max_bl = max(plan["bl_pad"])

    out = pl.pallas_call(
        plan["kernel"],
        out_shape=jax.ShapeDtypeStruct((2, B), f32),
        scratch_shapes=[pltpu.VMEM((max_rows, max_bl), f32) for _ in range(n_buf)],
        compiler_params=pltpu.CompilerParams(vmem_limit_bytes=48 * 1024 * 1024),
    )(x2d, packed["bn_scale"], packed["bn_shift"], packed["wslab"],
      packed["wfcT"], packed["fc_b"], packed["gap"], embT, *packed["pools"])

    return out[0], out[1]


# ----------------------------------------------------------------------------
if __name__ == "__main__":
    key = jax.random.PRNGKey(0)
    kp, kx, ki = jax.random.split(key, 3)

    # Small shapes consistent with the module: x is (B, in_channels, seq_len), id is (B,)
    B, C_in, L = 2, 4, 16
    n_assets = 8
    cfg = dict(n_blocks=2, n_block_layers=3, growth_rate=8, channel_reduction=0.5)

    params = init_params(kp, C_in, n_assets, **cfg)
    plan, packed = prepack(params, C_in, B, L)     # one-time host-side packing

    x = jax.random.normal(kx, (B, C_in, L), jnp.float32)
    ids = jax.random.randint(ki, (B,), 0, n_assets, dtype=jnp.int32)

    p0, p1 = backbone_forward(plan, packed, x, ids)
    jax.block_until_ready((p0, p1))
    assert p0.shape == (B,) and p1.shape == (B,)
    assert bool(jnp.all(jnp.isfinite(p0))) and bool(jnp.all(jnp.isfinite(p1)))
    print("KERNEL_OK")
</pallas_src>

<mosaic_0001>
module attributes {stable_mosaic.version = 11 : i64} {
  func.func @kernel(%arg0: memref<8x128xbf16, #tpu.memory_space<vmem>>, %arg1: memref<56x8xf32, #tpu.memory_space<vmem>>, %arg2: memref<56x8xf32, #tpu.memory_space<vmem>>, %arg3: memref<272x128xbf16, #tpu.memory_space<vmem>>, %arg4: memref<2x56xbf16, #tpu.memory_space<vmem>>, %arg5: memref<2x1xf32, #tpu.memory_space<vmem>>, %arg6: memref<128x2xbf16, #tpu.memory_space<vmem>>, %arg7: memref<56x2xf32, #tpu.memory_space<vmem>>, %arg8: memref<128x128xbf16, #tpu.memory_space<vmem>>, %arg9: memref<2x2xf32, #tpu.memory_space<vmem>>, %arg10: memref<56x128xf32, #tpu.memory_space<vmem>>, %arg11: memref<56x128xf32, #tpu.memory_space<vmem>>) attributes {dimension_semantics = [], scalar_prefetch = 0 : i64, scratch_operands = 2 : i64, tpu.core_type = #tpu.core_type<tc>} {
    %c0 = arith.constant 0 : index
    %c0_0 = arith.constant 0 : index
    %0 = vector.load %arg1[%c0, %c0_0] : memref<56x8xf32, #tpu.memory_space<vmem>>, vector<56x8xf32>
    %c0_1 = arith.constant 0 : index
    %c0_2 = arith.constant 0 : index
    %1 = vector.load %arg2[%c0_1, %c0_2] : memref<56x8xf32, #tpu.memory_space<vmem>>, vector<56x8xf32>
    %c0_3 = arith.constant 0 : index
    %c0_4 = arith.constant 0 : index
    %2 = vector.load %arg3[%c0_3, %c0_4] : memref<272x128xbf16, #tpu.memory_space<vmem>>, vector<96x8xbf16>
    %c0_5 = arith.constant 0 : index
    %c0_6 = arith.constant 0 : index
    %3 = vector.load %arg0[%c0_5, %c0_6] : memref<8x128xbf16, #tpu.memory_space<vmem>>, vector<8x128xbf16>
    %cst = arith.constant dense<0.000000e+00> : vector<96x128xf32>
    %4 = tpu.matmul %2, %3, %cst {dimension_numbers = #tpu.dot_dimension_numbers<[1], [0], [0], [1], [0, 0, 1, 1], [], []>} : vector<96x8xbf16>, vector<8x128xbf16>, vector<96x128xf32> -> vector<96x128xf32>
    %5 = tpu.iota {dimensions = array<i32: 1>} : vector<1x128xi32>
    %c16_i32 = arith.constant 16 : i32
    %c0_i32 = arith.constant 0 : i32
    %6 = arith.cmpi eq, %c16_i32, %c0_i32 : i32
    %c1_i32 = arith.constant 1 : i32
    %7 = arith.select %6, %c1_i32, %c16_i32 : i32
    %8 = vector.broadcast %7 : i32 to vector<1x128xi32>
    %9 = arith.remsi %5, %8 : vector<1x128xi32>
    %c0_i32_7 = arith.constant 0 : i32
    %10 = vector.broadcast %c0_i32_7 : i32 to vector<1x128xi32>
    %11 = arith.cmpi ne, %9, %10 : vector<1x128xi32>
    %c0_i32_8 = arith.constant 0 : i32
    %12 = vector.broadcast %c0_i32_8 : i32 to vector<1x128xi32>
    %13 = arith.cmpi slt, %9, %12 : vector<1x128xi32>
    %c0_i32_9 = arith.constant 0 : i32
    %14 = arith.cmpi slt, %7, %c0_i32_9 : i32
    %15 = vector.broadcast %14 : i1 to vector<1x128xi1>
    %16 = vector.broadcast %15 : vector<1x128xi1> to vector<1x128xi1>
    %17 = arith.xori %13, %16 : vector<1x128xi1>
    %18 = arith.andi %17, %11 : vector<1x128xi1>
    %19 = vector.broadcast %7 : i32 to vector<1x128xi32>
    %20 = arith.addi %9, %19 : vector<1x128xi32>
    %21 = arith.select %18, %20, %9 : vector<1x128xi1>, vector<1x128xi32>
    %c0_i32_10 = arith.constant 0 : i32
    %22 = vector.broadcast %c0_i32_10 : i32 to vector<1x128xi32>
    %23 = arith.cmpi ne, %21, %22 : vector<1x128xi32>
    %24 = arith.extui %23 : vector<1x128xi1> to vector<1x128xi32>
    %25 = arith.sitofp %24 : vector<1x128xi32> to vector<1x128xf32>
    %c16_i32_11 = arith.constant 16 : i32
    %c0_i32_12 = arith.constant 0 : i32
    %26 = arith.cmpi eq, %c16_i32_11, %c0_i32_12 : i32
    %c1_i32_13 = arith.constant 1 : i32
    %27 = arith.select %26, %c1_i32_13, %c16_i32_11 : i32
    %28 = vector.broadcast %27 : i32 to vector<1x128xi32>
    %29 = arith.remsi %5, %28 : vector<1x128xi32>
    %c0_i32_14 = arith.constant 0 : i32
    %30 = vector.broadcast %c0_i32_14 : i32 to vector<1x128xi32>
    %31 = arith.cmpi ne, %29, %30 : vector<1x128xi32>
    %c0_i32_15 = arith.constant 0 : i32
    %32 = vector.broadcast %c0_i32_15 : i32 to vector<1x128xi32>
    %33 = arith.cmpi slt, %29, %32 : vector<1x128xi32>
    %c0_i32_16 = arith.constant 0 : i32
    %34 = arith.cmpi slt, %27, %c0_i32_16 : i32
    %35 = vector.broadcast %34 : i1 to vector<1x128xi1>
    %36 = vector.broadcast %35 : vector<1x128xi1> to vector<1x128xi1>
    %37 = arith.xori %33, %36 : vector<1x128xi1>
    %38 = arith.andi %37, %31 : vector<1x128xi1>
    %39 = vector.broadcast %27 : i32 to vector<1x128xi32>
    %40 = arith.addi %29, %39 : vector<1x128xi32>
    %41 = arith.select %38, %40, %29 : vector<1x128xi1>, vector<1x128xi32>
    %c15_i32 = arith.constant 15 : i32
    %42 = vector.broadcast %c15_i32 : i32 to vector<1x128xi32>
    %43 = arith.cmpi ne, %41, %42 : vector<1x128xi32>
    %44 = arith.extui %43 : vector<1x128xi1> to vector<1x128xi32>
    %45 = arith.sitofp %44 : vector<1x128xi32> to vector<1x128xf32>
    %46 = vector.extract_strided_slice %4 {offsets = [32, 0], sizes = [32, 128], strides = [1, 1]} : vector<96x128xf32> to vector<32x128xf32>
    %47 = vector.extract_strided_slice %4 {offsets = [0, 0], sizes = [32, 128], strides = [1, 1]} : vector<96x128xf32> to vector<32x128xf32>
    %c1_i32_17 = arith.constant 1 : i32
    %48 = tpu.dynamic_rotate %47 by %c1_i32_17 dim 1 : vector<32x128xf32>, i32 -> vector<32x128xf32>
    %49 = vector.broadcast %25 : vector<1x128xf32> to vector<32x128xf32>
    %50 = arith.mulf %48, %49 : vector<32x128xf32>
    %51 = arith.addf %46, %50 : vector<32x128xf32>
    %52 = vector.extract_strided_slice %4 {offsets = [64, 0], sizes = [32, 128], strides = [1, 1]} : vector<96x128xf32> to vector<32x128xf32>
    %c127_i32 = arith.constant 127 : i32
    %53 = tpu.dynamic_rotate %52 by %c127_i32 dim 1 : vector<32x128xf32>, i32 -> vector<32x128xf32>
    %54 = vector.broadcast %45 : vector<1x128xf32> to vector<32x128xf32>
    %55 = arith.mulf %53, %54 : vector<32x128xf32>
    %56 = arith.addf %51, %55 : vector<32x128xf32>
    %c0_18 = arith.constant 0 : index
    %c0_19 = arith.constant 0 : index
    %57 = vector.load %arg10[%c0_18, %c0_19] : memref<56x128xf32, #tpu.memory_space<vmem>>, vector<32x128xf32>
    tpu.vector_store %arg10[%c0_18, %c0_19], %56 {strides = array<i32>} : memref<56x128xf32, #tpu.memory_space<vmem>>, vector<32x128xf32>,
    %c96 = arith.constant 96 : index
    %c0_20 = arith.constant 0 : index
    %58 = vector.load %arg3[%c96, %c0_20] : memref<272x128xbf16, #tpu.memory_space<vmem>>, vector<24x32xbf16>
    %c0_21 = arith.constant 0 : index
    %c0_22 = arith.constant 0 : index
    %59 = vector.load %arg10[%c0_21, %c0_22] : memref<56x128xf32, #tpu.memory_space<vmem>>, vector<32x128xf32>
    %60 = vector.extract_strided_slice %0 {offsets = [0, 0], sizes = [32, 1], strides = [1, 1]} : vector<56x8xf32> to vector<32x1xf32>
    %61 = vector.broadcast %60 : vector<32x1xf32> to vector<32x128xf32>
    %62 = arith.mulf %59, %61 : vector<32x128xf32>
    %63 = vector.extract_strided_slice %1 {offsets = [0, 0], sizes = [32, 1], strides = [1, 1]} : vector<56x8xf32> to vector<32x1xf32>
    %64 = vector.broadcast %63 : vector<32x1xf32> to vector<32x128xf32>
    %65 = arith.addf %62, %64 : vector<32x128xf32>
    %cst_23 = arith.constant 0.000000e+00 : f32
    %66 = vector.broadcast %cst_23 : f32 to vector<32x128xf32>
    %67 = arith.maximumf %65, %66 : vector<32x128xf32>
    %68 = arith.truncf %67 : vector<32x128xf32> to vector<32x128xbf16>
    %cst_24 = arith.constant dense<0.000000e+00> : vector<24x128xf32>
    %69 = tpu.matmul %58, %68, %cst_24 {dimension_numbers = #tpu.dot_dimension_numbers<[1], [0], [0], [1], [0, 0, 1, 1], [], []>} : vector<24x32xbf16>, vector<32x128xbf16>, vector<24x128xf32> -> vector<24x128xf32>
    %70 = vector.extract_strided_slice %69 {offsets = [8, 0], sizes = [8, 128], strides = [1, 1]} : vector<24x128xf32> to vector<8x128xf32>
    %71 = vector.extract_strided_slice %69 {offsets = [0, 0], sizes = [8, 128], strides = [1, 1]} : vector<24x128xf32> to vector<8x128xf32>
    %c1_i32_25 = arith.constant 1 : i32
    %72 = tpu.dynamic_rotate %71 by %c1_i32_25 dim 1 : vector<8x128xf32>, i32 -> vector<8x128xf32>
    %73 = vector.broadcast %25 : vector<1x128xf32> to vector<8x128xf32>
    %74 = arith.mulf %72, %73 : vector<8x128xf32>
    %75 = arith.addf %70, %74 : vector<8x128xf32>
    %76 = vector.extract_strided_slice %69 {offsets = [16, 0], sizes = [8, 128], strides = [1, 1]} : vector<24x128xf32> to vector<8x128xf32>
    %c127_i32_26 = arith.constant 127 : i32
    %77 = tpu.dynamic_rotate %76 by %c127_i32_26 dim 1 : vector<8x128xf32>, i32 -> vector<8x128xf32>
    %78 = vector.broadcast %45 : vector<1x128xf32> to vector<8x128xf32>
    %79 = arith.mulf %77, %78 : vector<8x128xf32>
    %80 = arith.addf %75, %79 : vector<8x128xf32>
    %c32 = arith.constant 32 : index
    %c0_27 = arith.constant 0 : index
    %81 = vector.load %arg10[%c32, %c0_27] : memref<56x128xf32, #tpu.memory_space<vmem>>, vector<8x128xf32>
    tpu.vector_store %arg10[%c32, %c0_27], %80 {strides = array<i32>} : memref<56x128xf32, #tpu.memory_space<vmem>>, vector<8x128xf32>,
    %c120 = arith.constant 120 : index
    %c0_28 = arith.constant 0 : index
    %82 = vector.load %arg3[%c120, %c0_28] : memref<272x128xbf16, #tpu.memory_space<vmem>>, vector<24x40xbf16>
    %c0_29 = arith.constant 0 : index
    %c0_30 = arith.constant 0 : index
    %83 = vector.load %arg10[%c0_29, %c0_30] : memref<56x128xf32, #tpu.memory_space<vmem>>, vector<40x128xf32>
    %84 = vector.extract_strided_slice %0 {offsets = [0, 1], sizes = [40, 1], strides = [1, 1]} : vector<56x8xf32> to vector<40x1xf32>
    %85 = vector.broadcast %84 : vector<40x1xf32> to vector<40x128xf32>
    %86 = arith.mulf %83, %85 : vector<40x128xf32>
    %87 = vector.extract_strided_slice %1 {offsets = [0, 1], sizes = [40, 1], strides = [1, 1]} : vector<56x8xf32> to vector<40x1xf32>
    %88 = vector.broadcast %87 : vector<40x1xf32> to vector<40x128xf32>
    %89 = arith.addf %86, %88 : vector<40x128xf32>
    %cst_31 = arith.constant 0.000000e+00 : f32
    %90 = vector.broadcast %cst_31 : f32 to vector<40x128xf32>
    %91 = arith.maximumf %89, %90 : vector<40x128xf32>
    %92 = arith.truncf %91 : vector<40x128xf32> to vector<40x128xbf16>
    %cst_32 = arith.constant dense<0.000000e+00> : vector<24x128xf32>
    %93 = tpu.matmul %82, %92, %cst_32 {dimension_numbers = #tpu.dot_dimension_numbers<[1], [0], [0], [1], [0, 0, 1, 1], [], []>} : vector<24x40xbf16>, vector<40x128xbf16>, vector<24x128xf32> -> vector<24x128xf32>
    %94 = vector.extract_strided_slice %93 {offsets = [8, 0], sizes = [8, 128], strides = [1, 1]} : vector<24x128xf32> to vector<8x128xf32>
    %95 = vector.extract_strided_slice %93 {offsets = [0, 0], sizes = [8, 128], strides = [1, 1]} : vector<24x128xf32> to vector<8x128xf32>
    %c1_i32_33 = arith.constant 1 : i32
    %96 = tpu.dynamic_rotate %95 by %c1_i32_33 dim 1 : vector<8x128xf32>, i32 -> vector<8x128xf32>
    %97 = vector.broadcast %25 : vector<1x128xf32> to vector<8x128xf32>
    %98 = arith.mulf %96, %97 : vector<8x128xf32>
    %99 = arith.addf %94, %98 : vector<8x128xf32>
    %100 = vector.extract_strided_slice %93 {offsets = [16, 0], sizes = [8, 128], strides = [1, 1]} : vector<24x128xf32> to vector<8x128xf32>
    %c127_i32_34 = arith.constant 127 : i32
    %101 = tpu.dynamic_rotate %100 by %c127_i32_34 dim 1 : vector<8x128xf32>, i32 -> vector<8x128xf32>
    %102 = vector.broadcast %45 : vector<1x128xf32> to vector<8x128xf32>
    %103 = arith.mulf %101, %102 : vector<8x128xf32>
    %104 = arith.addf %99, %103 : vector<8x128xf32>
    %c40 = arith.constant 40 : index
    %c0_35 = arith.constant 0 : index
    %105 = vector.load %arg10[%c40, %c0_35] : memref<56x128xf32, #tpu.memory_space<vmem>>, vector<8x128xf32>
    tpu.vector_store %arg10[%c40, %c0_35], %104 {strides = array<i32>} : memref<56x128xf32, #tpu.memory_space<vmem>>, vector<8x128xf32>,
    %c144 = arith.constant 144 : index
    %c0_36 = arith.constant 0 : index
    %106 = vector.load %arg3[%c144, %c0_36] : memref<272x128xbf16, #tpu.memory_space<vmem>>, vector<24x48xbf16>
    %c0_37 = arith.constant 0 : index
    %c0_38 = arith.constant 0 : index
    %107 = vector.load %arg10[%c0_37, %c0_38] : memref<56x128xf32, #tpu.memory_space<vmem>>, vector<48x128xf32>
    %108 = vector.extract_strided_slice %0 {offsets = [0, 2], sizes = [48, 1], strides = [1, 1]} : vector<56x8xf32> to vector<48x1xf32>
    %109 = vector.broadcast %108 : vector<48x1xf32> to vector<48x128xf32>
    %110 = arith.mulf %107, %109 : vector<48x128xf32>
    %111 = vector.extract_strided_slice %1 {offsets = [0, 2], sizes = [48, 1], strides = [1, 1]} : vector<56x8xf32> to vector<48x1xf32>
    %112 = vector.broadcast %111 : vector<48x1xf32> to vector<48x128xf32>
    %113 = arith.addf %110, %112 : vector<48x128xf32>
    %cst_39 = arith.constant 0.000000e+00 : f32
    %114 = vector.broadcast %cst_39 : f32 to vector<48x128xf32>
    %115 = arith.maximumf %113, %114 : vector<48x128xf32>
    %116 = arith.truncf %115 : vector<48x128xf32> to vector<48x128xbf16>
    %cst_40 = arith.constant dense<0.000000e+00> : vector<24x128xf32>
    %117 = tpu.matmul %106, %116, %cst_40 {dimension_numbers = #tpu.dot_dimension_numbers<[1], [0], [0], [1], [0, 0, 1, 1], [], []>} : vector<24x48xbf16>, vector<48x128xbf16>, vector<24x128xf32> -> vector<24x128xf32>
    %118 = vector.extract_strided_slice %117 {offsets = [8, 0], sizes = [8, 128], strides = [1, 1]} : vector<24x128xf32> to vector<8x128xf32>
    %119 = vector.extract_strided_slice %117 {offsets = [0, 0], sizes = [8, 128], strides = [1, 1]} : vector<24x128xf32> to vector<8x128xf32>
    %c1_i32_41 = arith.constant 1 : i32
    %120 = tpu.dynamic_rotate %119 by %c1_i32_41 dim 1 : vector<8x128xf32>, i32 -> vector<8x128xf32>
    %121 = vector.broadcast %25 : vector<1x128xf32> to vector<8x128xf32>
    %122 = arith.mulf %120, %121 : vector<8x128xf32>
    %123 = arith.addf %118, %122 : vector<8x128xf32>
    %124 = vector.extract_strided_slice %117 {offsets = [16, 0], sizes = [8, 128], strides = [1, 1]} : vector<24x128xf32> to vector<8x128xf32>
    %c127_i32_42 = arith.constant 127 : i32
    %125 = tpu.dynamic_rotate %124 by %c127_i32_42 dim 1 : vector<8x128xf32>, i32 -> vector<8x128xf32>
    %126 = vector.broadcast %45 : vector<1x128xf32> to vector<8x128xf32>
    %127 = arith.mulf %125, %126 : vector<8x128xf32>
    %128 = arith.addf %123, %127 : vector<8x128xf32>
    %c48 = arith.constant 48 : index
    %c0_43 = arith.constant 0 : index
    %129 = vector.load %arg10[%c48, %c0_43] : memref<56x128xf32, #tpu.memory_space<vmem>>, vector<8x128xf32>
    tpu.vector_store %arg10[%c48, %c0_43], %128 {strides = array<i32>} : memref<56x128xf32, #tpu.memory_space<vmem>>, vector<8x128xf32>,
    %c168 = arith.constant 168 : index
    %c0_44 = arith.constant 0 : index
    %130 = vector.load %arg3[%c168, %c0_44] : memref<272x128xbf16, #tpu.memory_space<vmem>>, vector<32x56xbf16>
    %c0_45 = arith.constant 0 : index
    %c0_46 = arith.constant 0 : index
    %131 = vector.load %arg10[%c0_45, %c0_46] : memref<56x128xf32, #tpu.memory_space<vmem>>, vector<56x128xf32>
    %132 = vector.extract_strided_slice %0 {offsets = [0, 3], sizes = [56, 1], strides = [1, 1]} : vector<56x8xf32> to vector<56x1xf32>
    %133 = vector.broadcast %132 : vector<56x1xf32> to vector<56x128xf32>
    %134 = arith.mulf %131, %133 : vector<56x128xf32>
    %135 = vector.extract_strided_slice %1 {offsets = [0, 3], sizes = [56, 1], strides = [1, 1]} : vector<56x8xf32> to vector<56x1xf32>
    %136 = vector.broadcast %135 : vector<56x1xf32> to vector<56x128xf32>
    %137 = arith.addf %134, %136 : vector<56x128xf32>
    %cst_47 = arith.constant 0.000000e+00 : f32
    %138 = vector.broadcast %cst_47 : f32 to vector<56x128xf32>
    %139 = arith.maximumf %137, %138 : vector<56x128xf32>
    %140 = arith.truncf %139 : vector<56x128xf32> to vector<56x128xbf16>
    %cst_48 = arith.constant dense<0.000000e+00> : vector<32x128xf32>
    %141 = tpu.matmul %130, %140, %cst_48 {dimension_numbers = #tpu.dot_dimension_numbers<[1], [0], [0], [1], [0, 0, 1, 1], [], []>} : vector<32x56xbf16>, vector<56x128xbf16>, vector<32x128xf32> -> vector<32x128xf32>
    %142 = arith.truncf %141 : vector<32x128xf32> to vector<32x128xbf16>
    %c0_49 = arith.constant 0 : index
    %c0_50 = arith.constant 0 : index
    %143 = vector.load %arg8[%c0_49, %c0_50] : memref<128x128xbf16, #tpu.memory_space<vmem>>, vector<128x128xbf16>
    %cst_51 = arith.constant dense<0.000000e+00> : vector<32x128xf32>
    %144 = tpu.matmul %142, %143, %cst_51 {dimension_numbers = #tpu.dot_dimension_numbers<[1], [0], [0], [1], [0, 0, 1, 1], [], []>} : vector<32x128xbf16>, vector<128x128xbf16>, vector<32x128xf32> -> vector<32x128xf32>
    %c0_52 = arith.constant 0 : index
    %c0_53 = arith.constant 0 : index
    %145 = vector.load %arg11[%c0_52, %c0_53] : memref<56x128xf32, #tpu.memory_space<vmem>>, vector<32x128xf32>
    tpu.vector_store %arg11[%c0_52, %c0_53], %144 {strides = array<i32>} : memref<56x128xf32, #tpu.memory_space<vmem>>, vector<32x128xf32>,
    %c200 = arith.constant 200 : index
    %c0_54 = arith.constant 0 : index
    %146 = vector.load %arg3[%c200, %c0_54] : memref<272x128xbf16, #tpu.memory_space<vmem>>, vector<24x32xbf16>
    %c0_55 = arith.constant 0 : index
    %c0_56 = arith.constant 0 : index
    %147 = vector.load %arg11[%c0_55, %c0_56] : memref<56x128xf32, #tpu.memory_space<vmem>>, vector<32x128xf32>
    %148 = vector.extract_strided_slice %0 {offsets = [0, 4], sizes = [32, 1], strides = [1, 1]} : vector<56x8xf32> to vector<32x1xf32>
    %149 = vector.broadcast %148 : vector<32x1xf32> to vector<32x128xf32>
    %150 = arith.mulf %147, %149 : vector<32x128xf32>
    %151 = vector.extract_strided_slice %1 {offsets = [0, 4], sizes = [32, 1], strides = [1, 1]} : vector<56x8xf32> to vector<32x1xf32>
    %152 = vector.broadcast %151 : vector<32x1xf32> to vector<32x128xf32>
    %153 = arith.addf %150, %152 : vector<32x128xf32>
    %cst_57 = arith.constant 0.000000e+00 : f32
    %154 = vector.broadcast %cst_57 : f32 to vector<32x128xf32>
    %155 = arith.maximumf %153, %154 : vector<32x128xf32>
    %156 = arith.truncf %155 : vector<32x128xf32> to vector<32x128xbf16>
    %cst_58 = arith.constant dense<0.000000e+00> : vector<24x128xf32>
    %157 = tpu.matmul %146, %156, %cst_58 {dimension_numbers = #tpu.dot_dimension_numbers<[1], [0], [0], [1], [0, 0, 1, 1], [], []>} : vector<24x32xbf16>, vector<32x128xbf16>, vector<24x128xf32> -> vector<24x128xf32>
    %158 = tpu.iota {dimensions = array<i32: 1>} : vector<1x128xi32>
    %c8_i32 = arith.constant 8 : i32
    %c0_i32_59 = arith.constant 0 : i32
    %159 = arith.cmpi eq, %c8_i32, %c0_i32_59 : i32
    %c1_i32_60 = arith.constant 1 : i32
    %160 = arith.select %159, %c1_i32_60, %c8_i32 : i32
    %161 = vector.broadcast %160 : i32 to vector<1x128xi32>
    %162 = arith.remsi %158, %161 : vector<1x128xi32>
    %c0_i32_61 = arith.constant 0 : i32
    %163 = vector.broadcast %c0_i32_61 : i32 to vector<1x128xi32>
    %164 = arith.cmpi ne, %162, %163 : vector<1x128xi32>
    %c0_i32_62 = arith.constant 0 : i32
    %165 = vector.broadcast %c0_i32_62 : i32 to vector<1x128xi32>
    %166 = arith.cmpi slt, %162, %165 : vector<1x128xi32>
    %c0_i32_63 = arith.constant 0 : i32
    %167 = arith.cmpi slt, %160, %c0_i32_63 : i32
    %168 = vector.broadcast %167 : i1 to vector<1x128xi1>
    %169 = vector.broadcast %168 : vector<1x128xi1> to vector<1x128xi1>
    %170 = arith.xori %166, %169 : vector<1x128xi1>
    %171 = arith.andi %170, %164 : vector<1x128xi1>
    %172 = vector.broadcast %160 : i32 to vector<1x128xi32>
    %173 = arith.addi %162, %172 : vector<1x128xi32>
    %174 = arith.select %171, %173, %162 : vector<1x128xi1>, vector<1x128xi32>
    %c0_i32_64 = arith.constant 0 : i32
    %175 = vector.broadcast %c0_i32_64 : i32 to vector<1x128xi32>
    %176 = arith.cmpi ne, %174, %175 : vector<1x128xi32>
    %177 = arith.extui %176 : vector<1x128xi1> to vector<1x128xi32>
    %178 = arith.sitofp %177 : vector<1x128xi32> to vector<1x128xf32>
    %c8_i32_65 = arith.constant 8 : i32
    %c0_i32_66 = arith.constant 0 : i32
    %179 = arith.cmpi eq, %c8_i32_65, %c0_i32_66 : i32
    %c1_i32_67 = arith.constant 1 : i32
    %180 = arith.select %179, %c1_i32_67, %c8_i32_65 : i32
    %181 = vector.broadcast %180 : i32 to vector<1x128xi32>
    %182 = arith.remsi %158, %181 : vector<1x128xi32>
    %c0_i32_68 = arith.constant 0 : i32
    %183 = vector.broadcast %c0_i32_68 : i32 to vector<1x128xi32>
    %184 = arith.cmpi ne, %182, %183 : vector<1x128xi32>
    %c0_i32_69 = arith.constant 0 : i32
    %185 = vector.broadcast %c0_i32_69 : i32 to vector<1x128xi32>
    %186 = arith.cmpi slt, %182, %185 : vector<1x128xi32>
    %c0_i32_70 = arith.constant 0 : i32
    %187 = arith.cmpi slt, %180, %c0_i32_70 : i32
    %188 = vector.broadcast %187 : i1 to vector<1x128xi1>
    %189 = vector.broadcast %188 : vector<1x128xi1> to vector<1x128xi1>
    %190 = arith.xori %186, %189 : vector<1x128xi1>
    %191 = arith.andi %190, %184 : vector<1x128xi1>
    %192 = vector.broadcast %180 : i32 to vector<1x128xi32>
    %193 = arith.addi %182, %192 : vector<1x128xi32>
    %194 = arith.select %191, %193, %182 : vector<1x128xi1>, vector<1x128xi32>
    %c7_i32 = arith.constant 7 : i32
    %195 = vector.broadcast %c7_i32 : i32 to vector<1x128xi32>
    %196 = arith.cmpi ne, %194, %195 : vector<1x128xi32>
    %197 = arith.extui %196 : vector<1x128xi1> to vector<1x128xi32>
    %198 = arith.sitofp %197 : vector<1x128xi32> to vector<1x128xf32>
    %199 = vector.extract_strided_slice %157 {offsets = [8, 0], sizes = [8, 128], strides = [1, 1]} : vector<24x128xf32> to vector<8x128xf32>
    %200 = vector.extract_strided_slice %157 {offsets = [0, 0], sizes = [8, 128], strides = [1, 1]} : vector<24x128xf32> to vector<8x128xf32>
    %c1_i32_71 = arith.constant 1 : i32
    %201 = tpu.dynamic_rotate %200 by %c1_i32_71 dim 1 : vector<8x128xf32>, i32 -> vector<8x128xf32>
    %202 = vector.broadcast %178 : vector<1x128xf32> to vector<8x128xf32>
    %203 = arith.mulf %201, %202 : vector<8x128xf32>
    %204 = arith.addf %199, %203 : vector<8x128xf32>
    %205 = vector.extract_strided_slice %157 {offsets = [16, 0], sizes = [8, 128], strides = [1, 1]} : vector<24x128xf32> to vector<8x128xf32>
    %c127_i32_72 = arith.constant 127 : i32
    %206 = tpu.dynamic_rotate %205 by %c127_i32_72 dim 1 : vector<8x128xf32>, i32 -> vector<8x128xf32>
    %207 = vector.broadcast %198 : vector<1x128xf32> to vector<8x128xf32>
    %208 = arith.mulf %206, %207 : vector<8x128xf32>
    %209 = arith.addf %204, %208 : vector<8x128xf32>
    %c32_73 = arith.constant 32 : index
    %c0_74 = arith.constant 0 : index
    %210 = vector.load %arg11[%c32_73, %c0_74] : memref<56x128xf32, #tpu.memory_space<vmem>>, vector<8x128xf32>
    tpu.vector_store %arg11[%c32_73, %c0_74], %209 {strides = array<i32>} : memref<56x128xf32, #tpu.memory_space<vmem>>, vector<8x128xf32>,
    %c224 = arith.constant 224 : index
    %c0_75 = arith.constant 0 : index
    %211 = vector.load %arg3[%c224, %c0_75] : memref<272x128xbf16, #tpu.memory_space<vmem>>, vector<24x40xbf16>
    %c0_76 = arith.constant 0 : index
    %c0_77 = arith.constant 0 : index
    %212 = vector.load %arg11[%c0_76, %c0_77] : memref<56x128xf32, #tpu.memory_space<vmem>>, vector<40x128xf32>
    %213 = vector.extract_strided_slice %0 {offsets = [0, 5], sizes = [40, 1], strides = [1, 1]} : vector<56x8xf32> to vector<40x1xf32>
    %214 = vector.broadcast %213 : vector<40x1xf32> to vector<40x128xf32>
    %215 = arith.mulf %212, %214 : vector<40x128xf32>
    %216 = vector.extract_strided_slice %1 {offsets = [0, 5], sizes = [40, 1], strides = [1, 1]} : vector<56x8xf32> to vector<40x1xf32>
    %217 = vector.broadcast %216 : vector<40x1xf32> to vector<40x128xf32>
    %218 = arith.addf %215, %217 : vector<40x128xf32>
    %cst_78 = arith.constant 0.000000e+00 : f32
    %219 = vector.broadcast %cst_78 : f32 to vector<40x128xf32>
    %220 = arith.maximumf %218, %219 : vector<40x128xf32>
    %221 = arith.truncf %220 : vector<40x128xf32> to vector<40x128xbf16>
    %cst_79 = arith.constant dense<0.000000e+00> : vector<24x128xf32>
    %222 = tpu.matmul %211, %221, %cst_79 {dimension_numbers = #tpu.dot_dimension_numbers<[1], [0], [0], [1], [0, 0, 1, 1], [], []>} : vector<24x40xbf16>, vector<40x128xbf16>, vector<24x128xf32> -> vector<24x128xf32>
    %223 = vector.extract_strided_slice %222 {offsets = [8, 0], sizes = [8, 128], strides = [1, 1]} : vector<24x128xf32> to vector<8x128xf32>
    %224 = vector.extract_strided_slice %222 {offsets = [0, 0], sizes = [8, 128], strides = [1, 1]} : vector<24x128xf32> to vector<8x128xf32>
    %c1_i32_80 = arith.constant 1 : i32
    %225 = tpu.dynamic_rotate %224 by %c1_i32_80 dim 1 : vector<8x128xf32>, i32 -> vector<8x128xf32>
    %226 = vector.broadcast %178 : vector<1x128xf32> to vector<8x128xf32>
    %227 = arith.mulf %225, %226 : vector<8x128xf32>
    %228 = arith.addf %223, %227 : vector<8x128xf32>
    %229 = vector.extract_strided_slice %222 {offsets = [16, 0], sizes = [8, 128], strides = [1, 1]} : vector<24x128xf32> to vector<8x128xf32>
    %c127_i32_81 = arith.constant 127 : i32
    %230 = tpu.dynamic_rotate %229 by %c127_i32_81 dim 1 : vector<8x128xf32>, i32 -> vector<8x128xf32>
    %231 = vector.broadcast %198 : vector<1x128xf32> to vector<8x128xf32>
    %232 = arith.mulf %230, %231 : vector<8x128xf32>
    %233 = arith.addf %228, %232 : vector<8x128xf32>
    %c40_82 = arith.constant 40 : index
    %c0_83 = arith.constant 0 : index
    %234 = vector.load %arg11[%c40_82, %c0_83] : memref<56x128xf32, #tpu.memory_space<vmem>>, vector<8x128xf32>
    tpu.vector_store %arg11[%c40_82, %c0_83], %233 {strides = array<i32>} : memref<56x128xf32, #tpu.memory_space<vmem>>, vector<8x128xf32>,
    %c248 = arith.constant 248 : index
    %c0_84 = arith.constant 0 : index
    %235 = vector.load %arg3[%c248, %c0_84] : memref<272x128xbf16, #tpu.memory_space<vmem>>, vector<24x48xbf16>
    %c0_85 = arith.constant 0 : index
    %c0_86 = arith.constant 0 : index
    %236 = vector.load %arg11[%c0_85, %c0_86] : memref<56x128xf32, #tpu.memory_space<vmem>>, vector<48x128xf32>
    %237 = vector.extract_strided_slice %0 {offsets = [0, 6], sizes = [48, 1], strides = [1, 1]} : vector<56x8xf32> to vector<48x1xf32>
    %238 = vector.broadcast %237 : vector<48x1xf32> to vector<48x128xf32>
    %239 = arith.mulf %236, %238 : vector<48x128xf32>
    %240 = vector.extract_strided_slice %1 {offsets = [0, 6], sizes = [48, 1], strides = [1, 1]} : vector<56x8xf32> to vector<48x1xf32>
    %241 = vector.broadcast %240 : vector<48x1xf32> to vector<48x128xf32>
    %242 = arith.addf %239, %241 : vector<48x128xf32>
    %cst_87 = arith.constant 0.000000e+00 : f32
    %243 = vector.broadcast %cst_87 : f32 to vector<48x128xf32>
    %244 = arith.maximumf %242, %243 : vector<48x128xf32>
    %245 = arith.truncf %244 : vector<48x128xf32> to vector<48x128xbf16>
    %cst_88 = arith.constant dense<0.000000e+00> : vector<24x128xf32>
    %246 = tpu.matmul %235, %245, %cst_88 {dimension_numbers = #tpu.dot_dimension_numbers<[1], [0], [0], [1], [0, 0, 1, 1], [], []>} : vector<24x48xbf16>, vector<48x128xbf16>, vector<24x128xf32> -> vector<24x128xf32>
    %247 = vector.extract_strided_slice %246 {offsets = [8, 0], sizes = [8, 128], strides = [1, 1]} : vector<24x128xf32> to vector<8x128xf32>
    %248 = vector.extract_strided_slice %246 {offsets = [0, 0], sizes = [8, 128], strides = [1, 1]} : vector<24x128xf32> to vector<8x128xf32>
    %c1_i32_89 = arith.constant 1 : i32
    %249 = tpu.dynamic_rotate %248 by %c1_i32_89 dim 1 : vector<8x128xf32>, i32 -> vector<8x128xf32>
    %250 = vector.broadcast %178 : vector<1x128xf32> to vector<8x128xf32>
    %251 = arith.mulf %249, %250 : vector<8x128xf32>
    %252 = arith.addf %247, %251 : vector<8x128xf32>
    %253 = vector.extract_strided_slice %246 {offsets = [16, 0], sizes = [8, 128], strides = [1, 1]} : vector<24x128xf32> to vector<8x128xf32>
    %c127_i32_90 = arith.constant 127 : i32
    %254 = tpu.dynamic_rotate %253 by %c127_i32_90 dim 1 : vector<8x128xf32>, i32 -> vector<8x128xf32>
    %255 = vector.broadcast %198 : vector<1x128xf32> to vector<8x128xf32>
    %256 = arith.mulf %254, %255 : vector<8x128xf32>
    %257 = arith.addf %252, %256 : vector<8x128xf32>
    %c48_91 = arith.constant 48 : index
    %c0_92 = arith.constant 0 : index
    %258 = vector.load %arg11[%c48_91, %c0_92] : memref<56x128xf32, #tpu.memory_space<vmem>>, vector<8x128xf32>
    tpu.vector_store %arg11[%c48_91, %c0_92], %257 {strides = array<i32>} : memref<56x128xf32, #tpu.memory_space<vmem>>, vector<8x128xf32>,
    %c0_93 = arith.constant 0 : index
    %c0_94 = arith.constant 0 : index
    %259 = vector.load %arg11[%c0_93, %c0_94] : memref<56x128xf32, #tpu.memory_space<vmem>>, vector<56x128xf32>
    %260 = vector.extract_strided_slice %0 {offsets = [0, 7], sizes = [56, 1], strides = [1, 1]} : vector<56x8xf32> to vector<56x1xf32>
    %261 = vector.broadcast %260 : vector<56x1xf32> to vector<56x128xf32>
    %262 = arith.mulf %259, %261 : vector<56x128xf32>
    %263 = vector.extract_strided_slice %1 {offsets = [0, 7], sizes = [56, 1], strides = [1, 1]} : vector<56x8xf32> to vector<56x1xf32>
    %264 = vector.broadcast %263 : vector<56x1xf32> to vector<56x128xf32>
    %265 = arith.addf %262, %264 : vector<56x128xf32>
    %cst_95 = arith.constant 0.000000e+00 : f32
    %266 = vector.broadcast %cst_95 : f32 to vector<56x128xf32>
    %267 = arith.maximumf %265, %266 : vector<56x128xf32>
    %268 = arith.truncf %267 : vector<56x128xf32> to vector<56x128xbf16>
    %c0_96 = arith.constant 0 : index
    %c0_97 = arith.constant 0 : index
    %269 = vector.load %arg6[%c0_96, %c0_97] : memref<128x2xbf16, #tpu.memory_space<vmem>>, vector<128x2xbf16>
    %cst_98 = arith.constant dense<0.000000e+00> : vector<56x2xf32>
    %270 = tpu.matmul %268, %269, %cst_98 {dimension_numbers = #tpu.dot_dimension_numbers<[1], [0], [0], [1], [0, 0, 1, 1], [], []>} : vector<56x128xbf16>, vector<128x2xbf16>, vector<56x2xf32> -> vector<56x2xf32>
    %c0_99 = arith.constant 0 : index
    %c0_100 = arith.constant 0 : index
    %271 = vector.load %arg4[%c0_99, %c0_100] : memref<2x56xbf16, #tpu.memory_space<vmem>>, vector<2x56xbf16>
    %272 = arith.truncf %270 : vector<56x2xf32> to vector<56x2xbf16>
    %cst_101 = arith.constant dense<0.000000e+00> : vector<2x2xf32>
    %273 = tpu.matmul %271, %272, %cst_101 {dimension_numbers = #tpu.dot_dimension_numbers<[1], [0], [0], [1], [0, 0, 1, 1], [], []>} : vector<2x56xbf16>, vector<56x2xbf16>, vector<2x2xf32> -> vector<2x2xf32>
    %c0_102 = arith.constant 0 : index
    %c0_103 = arith.constant 0 : index
    %274 = vector.load %arg7[%c0_102, %c0_103] : memref<56x2xf32, #tpu.memory_space<vmem>>, vector<56x2xf32>
    %275 = arith.mulf %270, %274 : vector<56x2xf32>
    %cst_104 = arith.constant dense<0.000000e+00> : vector<2xf32>
    %276 = vector.multi_reduction <add>, %275, %cst_104 [0] : vector<56x2xf32> to vector<2xf32>
    %277 = vector.shape_cast %276 : vector<2xf32> to vector<1x2xf32>
    %c0_105 = arith.constant 0 : index
    %c0_106 = arith.constant 0 : index
    %278 = vector.load %arg5[%c0_105, %c0_106] : memref<2x1xf32, #tpu.memory_space<vmem>>, vector<2x1xf32>
    %279 = vector.broadcast %278 : vector<2x1xf32> to vector<2x2xf32>
    %280 = arith.addf %273, %279 : vector<2x2xf32>
    %281 = vector.broadcast %277 : vector<1x2xf32> to vector<2x2xf32>
    %282 = arith.addf %280, %281 : vector<2x2xf32>
    %283 = tpu.iota {dimensions = array<i32: 0>} : vector<2x2xi32>
    %c0_i32_107 = arith.constant 0 : i32
    %284 = vector.broadcast %c0_i32_107 : i32 to vector<2x2xi32>
    %285 = arith.cmpi eq, %283, %284 : vector<2x2xi32>
    %cst_108 = arith.constant 0.000000e+00 : f32
    %286 = vector.broadcast %cst_108 : f32 to vector<2x2xf32>
    %287 = arith.subf %286, %282 : vector<2x2xf32>
    %288 = math.exp %287 : vector<2x2xf32>
    %cst_109 = arith.constant 1.000000e+00 : f32
    %289 = vector.broadcast %cst_109 : f32 to vector<2x2xf32>
    %290 = arith.addf %289, %288 : vector<2x2xf32>
    %cst_110 = arith.constant 1.000000e+00 : f32
    %291 = vector.broadcast %cst_110 : f32 to vector<2x2xf32>
    %292 = arith.divf %291, %290 : vector<2x2xf32>
    %293 = arith.select %285, %282, %292 : vector<2x2xi1>, vector<2x2xf32>
    %c0_111 = arith.constant 0 : index
    %c0_112 = arith.constant 0 : index
    %294 = vector.load %arg9[%c0_111, %c0_112] : memref<2x2xf32, #tpu.memory_space<vmem>>, vector<2x2xf32>
    tpu.vector_store %arg9[%c0_111, %c0_112], %293 {strides = array<i32>} : memref<2x2xf32, #tpu.memory_space<vmem>>, vector<2x2xf32>,
    return
  }
}

</mosaic_0001>

<llo_original>
// kernel: tpu_custom_call.1
$region0: #{tpu_custom_call.1}
  #allocation0 [shape = 'u32[]', space=smem, size = 0x4, offset = 0x4, fixed_abs, tag = 'smem constant byte address 0x4 - core index']
  #allocation1 [shape = 'u32[144,128]{1,0:T(1,128)}', space=vmem, size = 0x12000, scoped, tag = 'internal scratch']
  #allocation2 [shape = 'f32[56,128]{1,0:T(8,128)}', space=vmem, size = 0x7000, scoped, tag = 'scratch operand']
  #allocation3 [shape = 'f32[56,128]{1,0:T(8,128)}', space=vmem, size = 0x7000, scoped, tag = 'scratch operand']
  %s0 = inlined_call_operand.vmem [shape: bf16[8,128], index: 0, kind: input, shape index: {}]
  %s1 = inlined_call_operand.vmem [shape: f32[56,8], index: 1, kind: input, shape index: {}]
  %s2 = inlined_call_operand.vmem [shape: f32[56,8], index: 2, kind: input, shape index: {}]
  %s3 = inlined_call_operand.vmem [shape: bf16[272,128], index: 3, kind: input, shape index: {}]
  %s4 = inlined_call_operand.vmem [shape: bf16[2,56], index: 4, kind: input, shape index: {}]
  %s5 = inlined_call_operand.vmem [shape: f32[2,1], index: 5, kind: input, shape index: {}]
  %s6 = inlined_call_operand.vmem [shape: bf16[128,2], index: 6, kind: input, shape index: {}]
  %s7 = inlined_call_operand.vmem [shape: f32[56,2], index: 7, kind: input, shape index: {}]
  %s8 = inlined_call_operand.vmem [shape: bf16[128,128], index: 8, kind: input, shape index: {}]
  %s9 = inlined_call_operand.hbm [shape: f32[2,2], index: 9, kind: output, shape index: {}]
  %s10 = sld [smem:[#allocation0]]
  $region46: #{tpu_custom_call.1} parent=0
    _
  %s12 = ssub.s32 1, %s10
  %s13 = scalar_select 0, %s12, %s10
  $region1: #{tpu_custom_call.1} parent=0
    #allocation4 [shape = 'u8[1024]{0}', space=vmem, size = 0x400, scoped, tag = 'output window, operand 0, single buffered']
    #allocation5 [shape = 's32[1]{0}', space=sflag, size = 0x4, scoped, tag = 'scoped memory for tpu_custom_call.1']
    %14 = vsyncpa [#allocation5], 0
    // Predicated region
    $region2: #{tpu_custom_call.1} parent=1 // pred_check
      _
    $region3: #{tpu_custom_call.1} parent=1 // pred_check_branch
      %16 = sbr.rel (0) target = $region5
    $region4: #{tpu_custom_call.1} parent=1 // pred_region
      _
    $region5: #{tpu_custom_call.1} parent=1 // pred_fallthru
      _
    // Predicated region
    $region6: #{tpu_custom_call.1} parent=1 // pred_check
      _
    $region7: #{tpu_custom_call.1} parent=1 // pred_check_branch
      %18 = sbr.rel (0) target = $region9
    $region8: #{tpu_custom_call.1} parent=1 // pred_region
      _
    $region9: #{tpu_custom_call.1} parent=1 // pred_fallthru
      _
    // Predicated region
    $region10: #{tpu_custom_call.1} parent=1 // pred_check
      _
    $region11: #{tpu_custom_call.1} parent=1 // pred_check_branch
      %20 = sbr.rel (0) target = $region13
    $region12: #{tpu_custom_call.1} parent=1 // pred_region
      _
    $region13: #{tpu_custom_call.1} parent=1 // pred_fallthru
      _
    // Predicated region
    $region14: #{tpu_custom_call.1} parent=1 // pred_check
      _
    $region15: #{tpu_custom_call.1} parent=1 // pred_check_branch
      %22 = sbr.rel (0) target = $region17
    $region16: #{tpu_custom_call.1} parent=1 // pred_region
      _
    $region17: #{tpu_custom_call.1} parent=1 // pred_fallthru
      _
    // Predicated region
    $region18: #{tpu_custom_call.1} parent=1 // pred_check
      _
    $region19: #{tpu_custom_call.1} parent=1 // pred_check_branch
      %24 = sbr.rel (0) target = $region21
    $region20: #{tpu_custom_call.1} parent=1 // pred_region
      _
    $region21: #{tpu_custom_call.1} parent=1 // pred_fallthru
      _
    // Predicated region
    $region22: #{tpu_custom_call.1} parent=1 // pred_check
      _
    $region23: #{tpu_custom_call.1} parent=1 // pred_check_branch
      %26 = sbr.rel (0) target = $region25
    $region24: #{tpu_custom_call.1} parent=1 // pred_region
      _
    $region25: #{tpu_custom_call.1} parent=1 // pred_fallthru
      _
    // Predicated region
    $region26: #{tpu_custom_call.1} parent=1 // pred_check
      _
    $region27: #{tpu_custom_call.1} parent=1 // pred_check_branch
      %28 = sbr.rel (0) target = $region29
    $region28: #{tpu_custom_call.1} parent=1 // pred_region
      _
    $region29: #{tpu_custom_call.1} parent=1 // pred_fallthru
      _
    // Predicated region
    $region30: #{tpu_custom_call.1} parent=1 // pred_check
      _
    $region31: #{tpu_custom_call.1} parent=1 // pred_check_branch
      %30 = sbr.rel (0) target = $region33
    $region32: #{tpu_custom_call.1} parent=1 // pred_region
      _
    $region33: #{tpu_custom_call.1} parent=1 // pred_fallthru
      _
    // Predicated region
    $region34: #{tpu_custom_call.1} parent=1 // pred_check
      _
    $region35: #{tpu_custom_call.1} parent=1 // pred_check_branch
      %32 = sbr.rel (0) target = $region37
    $region36: #{tpu_custom_call.1} parent=1 // pred_region
      _
    $region37: #{tpu_custom_call.1} parent=1 // pred_fallthru
      _
    %v34 = vld [vmem:[%s1] sm:$0xff]
    %v35 = vld [vmem:[%s1 + $0x8] sm:$0xff]
    %v36 = vld [vmem:[%s1 + $0x10] sm:$0xff]
    %v37 = vld [vmem:[%s1 + $0x18] sm:$0xff]
    %v38 = vld [vmem:[%s1 + $0x20] sm:$0xff]
    %v39 = vld [vmem:[%s1 + $0x28] sm:$0xff]
    %v40 = vld [vmem:[%s1 + $0x30] sm:$0xff]
    %v41 = vld [vmem:[%s2] sm:$0xff]
    %v42 = vld [vmem:[%s2 + $0x8] sm:$0xff]
    %v43 = vld [vmem:[%s2 + $0x10] sm:$0xff]
    %v44 = vld [vmem:[%s2 + $0x18] sm:$0xff]
    %v45 = vld [vmem:[%s2 + $0x20] sm:$0xff]
    %v46 = vld [vmem:[%s2 + $0x28] sm:$0xff]
    %v47 = vld [vmem:[%s2 + $0x30] sm:$0xff]
    %v48 = vld [vmem:[%s3] sm:$0xf]
    %v49 = vld [vmem:[%s3 + $0x4] sm:$0xf]
    %v50 = vld [vmem:[%s3 + $0x8] sm:$0xf]
    %v51 = vld [vmem:[%s3 + $0xc] sm:$0xf]
    %v52 = vld [vmem:[%s3 + $0x10] sm:$0xf]
    %v53 = vld [vmem:[%s3 + $0x14] sm:$0xf]
    %v54 = vld [vmem:[%s3 + $0x18] sm:$0xf]
    %v55 = vld [vmem:[%s3 + $0x1c] sm:$0xf]
    %v56 = vld [vmem:[%s3 + $0x20] sm:$0xf]
    %v57 = vld [vmem:[%s3 + $0x24] sm:$0xf]
    %v58 = vld [vmem:[%s3 + $0x28] sm:$0xf]
    %v59 = vld [vmem:[%s3 + $0x2c] sm:$0xf]
    %v60 = vld [vmem:[%s0] sm:$0xf]
    %v73 = vunpack.c.l.b16 %v48
    %v74 = vunpack.c.l.b16 %v49
    %v75 = vunpack.c.l.b16 %v50
    %v76 = vunpack.c.l.b16 %v51
    %v77 = vunpack.c.l.b16 %v52
    %v78 = vunpack.c.l.b16 %v53
    %v79 = vunpack.c.l.b16 %v54
    %v80 = vunpack.c.l.b16 %v55
    %v81 = vunpack.c.l.b16 %v56
    %v82 = vunpack.c.l.b16 %v57
    %v83 = vunpack.c.l.b16 %v58
    %v84 = vunpack.c.l.b16 %v59
    %v85 = vpack.c.b16 %v74, %v73
    %v86 = vpack.c.b16 %v76, %v75
    %v87 = vpack.c.b16 %v78, %v77
    %v88 = vpack.c.b16 %v80, %v79
    %v89 = vpack.c.b16 %v82, %v81
    %v90 = vpack.c.b16 %v84, %v83
    %vm91 = vcmask 64512
    %v93 = vsel %vm91, %v85, 0
    %v96 = vsel %vm91, %v86, 0
    %v99 = vsel %vm91, %v87, 0
    %v102 = vsel %vm91, %v88, 0
    %v105 = vsel %vm91, %v89, 0
    %v108 = vsel %vm91, %v90, 0
    %vm110 = vcmask 1043456
    %v112 = vsel %vm110, %v60, 0
    %114 = vmatprep.subr.bf16.mxu0 0
    %115 = vmatpush1.bf16.msra.mxu0 %v112
    %116 = vmatprep.subr.bf16.mxu0 0
    %117 = vmatpush1.bf16.msra.mxu0 0
    %118 = vmatprep.subr.bf16.mxu0 0
    %119 = vmatpush1.bf16.msra.mxu0 0
    %120 = vmatprep.subr.bf16.mxu0 0
    %121 = vmatpush1.bf16.msra.mxu0 0
    %122 = vmatprep.subr.bf16.mxu0 0
    %123 = vmatpush1.bf16.msra.mxu0 0
    %124 = vmatprep.subr.bf16.mxu0 0
    %125 = vmatpush1.bf16.msra.mxu0 0
    %126 = vmatprep.subr.bf16.mxu0 0
    %127 = vmatpush1.bf16.msra.mxu0 0
    %128 = vmatprep.subr.bf16.mxu0 0
    %129 = vmatpush1.bf16.msra.mxu0 0
    %130 = vmatprep.subr.bf16.mxu0 0
    %131 = vmatpush1.bf16.msra.mxu0 0
    %132 = vmatprep.subr.bf16.mxu0 0
    %133 = vmatpush1.bf16.msra.mxu0 0
    %134 = vmatprep.subr.bf16.mxu0 0
    %135 = vmatpush1.bf16.msra.mxu0 0
    %136 = vmatprep.subr.bf16.mxu0 0
    %137 = vmatpush1.bf16.msra.mxu0 0
    %138 = vmatprep.subr.bf16.mxu0 0
    %139 = vmatpush1.bf16.msra.mxu0 0
    %140 = vmatprep.subr.bf16.mxu0 0
    %141 = vmatpush1.bf16.msra.mxu0 0
    %142 = vmatprep.subr.bf16.mxu0 0
    %143 = vmatpush1.bf16.msra.mxu0 0
    %144 = vmatprep.subr.bf16.mxu0 0
    %145 = vmatpush1.bf16.msra.mxu0 0
    %146 = vmatprep.mubr.bf16.mxu0 0
    %147 = vmatmul.mubr.bf16.gmra.mrb[0].mxu0 %v93
    %v148 = vpop.f32.mrb[0].mxu0
    %v149 = vadd.f32 0.0, %v148
    %v150 = vpop.f32.mrb[0].mxu0
    %v151 = vpop.f32.mrb[0].mxu0
    %v152 = vadd.f32 0.0, %v151
    %v153 = vpop.f32.mrb[0].mxu0
    %154 = vmatprep.mubr.bf16.mxu0 0
    %155 = vmatmul.mubr.bf16.gmra.mrb[0].mxu0 %v96
    %v156 = vpop.f32.mrb[0].mxu0
    %v157 = vadd.f32 0.0, %v156
    %v158 = vpop.f32.mrb[0].mxu0
    %v159 = vpop.f32.mrb[0].mxu0
    %v160 = vadd.f32 0.0, %v159
    %v161 = vpop.f32.mrb[0].mxu0
    %162 = vmatprep.mubr.bf16.mxu0 0
    %163 = vmatmul.mubr.bf16.gmra.mrb[0].mxu0 %v99
    %v164 = vpop.f32.mrb[0].mxu0
    %v165 = vadd.f32 0.0, %v164
    %v166 = vpop.f32.mrb[0].mxu0
    %v167 = vpop.f32.mrb[0].mxu0
    %v168 = vadd.f32 0.0, %v167
    %v169 = vpop.f32.mrb[0].mxu0
    %170 = vmatprep.mubr.bf16.mxu0 0
    %171 = vmatmul.mubr.bf16.gmra.mrb[0].mxu0 %v102
    %v172 = vpop.f32.mrb[0].mxu0
    %v173 = vadd.f32 0.0, %v172
    %v174 = vpop.f32.mrb[0].mxu0
    %v175 = vpop.f32.mrb[0].mxu0
    %v176 = vadd.f32 0.0, %v175
    %v177 = vpop.f32.mrb[0].mxu0
    %178 = vmatprep.mubr.bf16.mxu0 0
    %179 = vmatmul.mubr.bf16.gmra.mrb[0].mxu0 %v105
    %v180 = vpop.f32.mrb[0].mxu0
    %v181 = vadd.f32 0.0, %v180
    %v182 = vpop.f32.mrb[0].mxu0
    %v183 = vpop.f32.mrb[0].mxu0
    %v184 = vadd.f32 0.0, %v183
    %v185 = vpop.f32.mrb[0].mxu0
    %186 = vmatprep.mubr.bf16.mxu0 0
    %187 = vmatmul.mubr.bf16.gmra.mrb[0].mxu0 %v108
    %v188 = vpop.f32.mrb[0].mxu0
    %v189 = vadd.f32 0.0, %v188
    %v190 = vpop.f32.mrb[0].mxu0
    %v191 = vpop.f32.mrb[0].mxu0
    %v192 = vadd.f32 0.0, %v191
    %v193 = vpop.f32.mrb[0].mxu0
    %194 = vdwg.mxu0
    %v195 = vlaneseq
    %v196 = vand.u32 %v195, 127
    %vm197 = vcmp.lt.s32.totalorder %v196, 0
    %v198 = vsub.s32 0, %v196
    %v199 = vsel %vm197, %v198, %v196
    %v200 = vshrl.u32 %v199, 4
    %v201 = vand.u32 %v199, 15
    %v202 = vsub.s32 0, %v201
    %v203 = vsel %vm197, %v202, %v201
    %vm204 = vcmp.ne.s32.totalorder %v203, 0
    %vm205 = vcmp.lt.s32.totalorder %v203, 0
    %vm206 = vmand %vm205, %vm204
    %v207 = vadd.s32 %v203, 16
    %v208 = vsel %vm206, %v207, %v203
    %vm209 = vcmp.ne.s32.totalorder %v208, 0
    %v210 = vsel %vm209, 1, 0
    %v211 = vcvt.s32.f32 %v210
    %vm212 = vcmp.ne.s32.totalorder %v208, 15
    %v213 = vsel %vm212, 1, 0
    %v214 = vcvt.s32.f32 %v213
    %215 = vrot.lane.b32.xlu0 %v149, 1
    %v216 = vpop.permute.xlu0 %215
    %217 = vrot.lane.b32.xlu0 %v152, 1
    %v218 = vpop.permute.xlu0 %217
    %219 = vrot.lane.b32.xlu0 %v157, 1
    %v220 = vpop.permute.xlu0 %219
    %221 = vrot.lane.b32.xlu0 %v160, 1
    %v222 = vpop.permute.xlu0 %221
    %v223 = vmul.f32 %v216, %v211
    %v224 = vmul.f32 %v218, %v211
    %v225 = vmul.f32 %v220, %v211
    %v226 = vmul.f32 %v222, %v211
    %v227 = vadd.f32 %v165, %v223
    %v228 = vadd.f32 %v168, %v224
    %v229 = vadd.f32 %v173, %v225
    %v230 = vadd.f32 %v176, %v226
    %231 = vrot.lane.b32.xlu0 %v181, 127
    %v232 = vpop.permute.xlu0 %231
    %233 = vrot.lane.b32.xlu0 %v184, 127
    %v234 = vpop.permute.xlu0 %233
    %235 = vrot.lane.b32.xlu0 %v189, 127
    %v236 = vpop.permute.xlu0 %235
    %237 = vrot.lane.b32.xlu0 %v192, 127
    %v238 = vpop.permute.xlu0 %237
    %v239 = vmul.f32 %v232, %v214
    %v240 = vmul.f32 %v234, %v214
    %v241 = vmul.f32 %v236, %v214
    %v242 = vmul.f32 %v238, %v214
    %v243 = vadd.f32 %v227, %v239
    %v244 = vadd.f32 %v228, %v240
    %v245 = vadd.f32 %v229, %v241
    %v246 = vadd.f32 %v230, %v242
    %247 = vst [vmem:[#allocation2] sm:$0xff] %v243
    %248 = vst [vmem:[#allocation2 + $0x8] sm:$0xff] %v244
    %249 = vst [vmem:[#allocation2 + $0x10] sm:$0xff] %v245
    %250 = vst [vmem:[#allocation2 + $0x18] sm:$0xff] %v246
    %v251 = vld [vmem:[%s3 + $0x30] sm:$0xf]
    %v252 = vld [vmem:[%s3 + $0x34] sm:$0xf]
    %v253 = vld [vmem:[%s3 + $0x38] sm:$0xf]
    %v254 = vld [vmem:[#allocation2] sm:$0xff]
    %v255 = vld [vmem:[#allocation2 + $0x8] sm:$0xff]
    %v256 = vld [vmem:[#allocation2 + $0x10] sm:$0xff]
    %v257 = vld [vmem:[#allocation2 + $0x18] sm:$0xff]
    %259 = vset.pattern.permute.xlu0 0
    %260 = vperm.xlu0 %259, %v34
    %v261 = vpop.permute.xlu0 %260
    %264 = vset.pattern.permute.xlu0 0
    %265 = vperm.xlu0 %264, %v35
    %v266 = vpop.permute.xlu0 %265
    %269 = vset.pattern.permute.xlu0 0
    %270 = vperm.xlu0 %269, %v36
    %v271 = vpop.permute.xlu0 %270
    %274 = vset.pattern.permute.xlu0 0
    %275 = vperm.xlu0 %274, %v37
    %v276 = vpop.permute.xlu0 %275
    %v278 = vmul.f32 %v254, %v261
    %v279 = vmul.f32 %v255, %v266
    %v280 = vmul.f32 %v256, %v271
    %v281 = vmul.f32 %v257, %v276
    %283 = vset.pattern.permute.xlu0 0
    %284 = vperm.xlu0 %283, %v41
    %v285 = vpop.permute.xlu0 %284
    %288 = vset.pattern.permute.xlu0 0
    %289 = vperm.xlu0 %288, %v42
    %v290 = vpop.permute.xlu0 %289
    %293 = vset.pattern.permute.xlu0 0
    %294 = vperm.xlu0 %293, %v43
    %v295 = vpop.permute.xlu0 %294
    %298 = vset.pattern.permute.xlu0 0
    %299 = vperm.xlu0 %298, %v44
    %v300 = vpop.permute.xlu0 %299
    %v302 = vadd.f32 %v278, %v285
    %v303 = vadd.f32 %v279, %v290
    %v304 = vadd.f32 %v280, %v295
    %v305 = vadd.f32 %v281, %v300
    %v306 = vmax.f32 %v302, 0.0
    %v307 = vmax.f32 %v303, 0.0
    %v308 = vmax.f32 %v304, 0.0
    %v309 = vmax.f32 %v305, 0.0
    %v310 = vpack.c.bf16 %v307, %v306
    %v311 = vpack.c.bf16 %v309, %v308
    %v315 = vunpack.c.l.b16 %v251
    %v316 = vunpack.c.l.b16 %v252
    %v317 = vunpack.c.l.b16 %v253
    %v318 = vpack.c.b16 %v316, %v315
    %v319 = vpack.c.b16 %v317, %v317
    %vm320 = vcmask 261120
    %v322 = vsel %vm320, %v318, 0
    %v325 = vsel %vm320, %v319, 0
    %327 = vmatprep.subr.bf16.mxu0 0
    %328 = vmatpush1.bf16.msra.mxu0 %v310
    %329 = vmatprep.subr.bf16.mxu0 0
    %330 = vmatpush1.bf16.msra.mxu0 %v311
    %331 = vmatprep.subr.bf16.mxu0 0
    %332 = vmatpush1.bf16.msra.mxu0 0
    %333 = vmatprep.subr.bf16.mxu0 0
    %334 = vmatpush1.bf16.msra.mxu0 0
    %335 = vmatprep.subr.bf16.mxu0 0
    %336 = vmatpush1.bf16.msra.mxu0 0
    %337 = vmatprep.subr.bf16.mxu0 0
    %338 = vmatpush1.bf16.msra.mxu0 0
    %339 = vmatprep.subr.bf16.mxu0 0
    %340 = vmatpush1.bf16.msra.mxu0 0
    %341 = vmatprep.subr.bf16.mxu0 0
    %342 = vmatpush1.bf16.msra.mxu0 0
    %343 = vmatprep.subr.bf16.mxu0 0
    %344 = vmatpush1.bf16.msra.mxu0 0
    %345 = vmatprep.subr.bf16.mxu0 0
    %346 = vmatpush1.bf16.msra.mxu0 0
    %347 = vmatprep.subr.bf16.mxu0 0
    %348 = vmatpush1.bf16.msra.mxu0 0
    %349 = vmatprep.subr.bf16.mxu0 0
    %350 = vmatpush1.bf16.msra.mxu0 0
    %351 = vmatprep.subr.bf16.mxu0 0
    %352 = vmatpush1.bf16.msra.mxu0 0
    %353 = vmatprep.subr.bf16.mxu0 0
    %354 = vmatpush1.bf16.msra.mxu0 0
    %355 = vmatprep.subr.bf16.mxu0 0
    %356 = vmatpush1.bf16.msra.mxu0 0
    %357 = vmatprep.subr.bf16.mxu0 0
    %358 = vmatpush1.bf16.msra.mxu0 0
    %359 = vmatprep.mubr.bf16.mxu0 0
    %360 = vmatmul.mubr.bf16.gmra.mrb[0].mxu0 %v322
    %v361 = vpop.f32.mrb[0].mxu0
    %v362 = vadd.f32 0.0, %v361
    %v363 = vpop.f32.mrb[0].mxu0
    %v364 = vpop.f32.mrb[0].mxu0
    %v365 = vadd.f32 0.0, %v364
    %v366 = vpop.f32.mrb[0].mxu0
    %367 = vmatprep.mubr.bf16.mxu0 0
    %368 = vmatmul.mubr.bf16.gmra.mrb[0].mxu0 %v325
    %v369 = vpop.f32.mrb[0].mxu0
    %v370 = vadd.f32 0.0, %v369
    %v371 = vpop.f32.mrb[0].mxu0
    %v372 = vpop.f32.mrb[0].mxu0
    %v373 = vpop.f32.mrb[0].mxu0
    %374 = vdwg.mxu0
    %375 = vrot.lane.b32.xlu0 %v362, 1
    %v376 = vpop.permute.xlu0 %375
    %v377 = vmul.f32 %v376, %v211
    %v378 = vadd.f32 %v365, %v377
    %379 = vrot.lane.b32.xlu0 %v370, 127
    %v380 = vpop.permute.xlu0 %379
    %v381 = vmul.f32 %v380, %v214
    %v382 = vadd.f32 %v378, %v381
    %383 = vst [vmem:[#allocation2 + $0x20] sm:$0xff] %v382
    %v384 = vld [vmem:[%s3 + $0x3c] sm:$0xf]
    %v385 = vld [vmem:[%s3 + $0x40] sm:$0xf]
    %v386 = vld [vmem:[%s3 + $0x44] sm:$0xf]
    %v387 = vld [vmem:[#allocation2] sm:$0xff]
    %v388 = vld [vmem:[#allocation2 + $0x8] sm:$0xff]
    %v389 = vld [vmem:[#allocation2 + $0x10] sm:$0xff]
    %v390 = vld [vmem:[#allocation2 + $0x18] sm:$0xff]
    %v391 = vld [vmem:[#allocation2 + $0x20] sm:$0xff]
    %392 = vset.pattern.permute.xlu0 1
    %393 = vperm.xlu0 %392, %v34
    %v394 = vpop.permute.xlu0 %393
    %396 = vset.pattern.permute.xlu0 1
    %397 = vperm.xlu0 %396, %v35
    %v398 = vpop.permute.xlu0 %397
    %400 = vset.pattern.permute.xlu0 1
    %401 = vperm.xlu0 %400, %v36
    %v402 = vpop.permute.xlu0 %401
    %404 = vset.pattern.permute.xlu0 1
    %405 = vperm.xlu0 %404, %v37
    %v406 = vpop.permute.xlu0 %405
    %409 = vset.pattern.permute.xlu0 1
    %410 = vperm.xlu0 %409, %v38
    %v411 = vpop.permute.xlu0 %410
    %v413 = vmul.f32 %v387, %v394
    %v414 = vmul.f32 %v388, %v398
    %v415 = vmul.f32 %v389, %v402
    %v416 = vmul.f32 %v390, %v406
    %v417 = vmul.f32 %v391, %v411
    %418 = vset.pattern.permute.xlu0 1
    %419 = vperm.xlu0 %418, %v41
    %v420 = vpop.permute.xlu0 %419
    %422 = vset.pattern.permute.xlu0 1
    %423 = vperm.xlu0 %422, %v42
    %v424 = vpop.permute.xlu0 %423
    %426 = vset.pattern.permute.xlu0 1
    %427 = vperm.xlu0 %426, %v43
    %v428 = vpop.permute.xlu0 %427
    %430 = vset.pattern.permute.xlu0 1
    %431 = vperm.xlu0 %430, %v44
    %v432 = vpop.permute.xlu0 %431
    %435 = vset.pattern.permute.xlu0 1
    %436 = vperm.xlu0 %435, %v45
    %v437 = vpop.permute.xlu0 %436
    %v439 = vadd.f32 %v413, %v420
    %v440 = vadd.f32 %v414, %v424
    %v441 = vadd.f32 %v415, %v428
    %v442 = vadd.f32 %v416, %v432
    %v443 = vadd.f32 %v417, %v437
    %v444 = vmax.f32 %v439, 0.0
    %v445 = vmax.f32 %v440, 0.0
    %v446 = vmax.f32 %v441, 0.0
    %v447 = vmax.f32 %v442, 0.0
    %v448 = vmax.f32 %v443, 0.0
    %v449 = vpack.c.bf16 %v445, %v444
    %v450 = vpack.c.bf16 %v447, %v446
    %v451 = vpack.c.bf16 %v448, %v448
    %v455 = vunpack.c.l.b16 %v384
    %v456 = vunpack.c.l.b16 %v385
    %v457 = vunpack.c.l.b16 %v386
    %v458 = vpack.c.b16 %v456, %v455
    %v459 = vpack.c.b16 %v457, %v457
    %vm460 = vcmask 326656
    %v462 = vsel %vm460, %v458, 0
    %v465 = vsel %vm460, %v459, 0
    %v468 = vsel %vm110, %v451, 0
    %470 = vmatprep.subr.bf16.mxu0 0
    %471 = vmatpush1.bf16.msra.mxu0 %v449
    %472 = vmatprep.subr.bf16.mxu0 0
    %473 = vmatpush1.bf16.msra.mxu0 %v450
    %474 = vmatprep.subr.bf16.mxu0 0
    %475 = vmatpush1.bf16.msra.mxu0 %v468
    %476 = vmatprep.subr.bf16.mxu0 0
    %477 = vmatpush1.bf16.msra.mxu0 0
    %478 = vmatprep.subr.bf16.mxu0 0
    %479 = vmatpush1.bf16.msra.mxu0 0
    %480 = vmatprep.subr.bf16.mxu0 0
    %481 = vmatpush1.bf16.msra.mxu0 0
    %482 = vmatprep.subr.bf16.mxu0 0
    %483 = vmatpush1.bf16.msra.mxu0 0
    %484 = vmatprep.subr.bf16.mxu0 0
    %485 = vmatpush1.bf16.msra.mxu0 0
    %486 = vmatprep.subr.bf16.mxu0 0
    %487 = vmatpush1.bf16.msra.mxu0 0
    %488 = vmatprep.subr.bf16.mxu0 0
    %489 = vmatpush1.bf16.msra.mxu0 0
    %490 = vmatprep.subr.bf16.mxu0 0
    %491 = vmatpush1.bf16.msra.mxu0 0
    %492 = vmatprep.subr.bf16.mxu0 0
    %493 = vmatpush1.bf16.msra.mxu0 0
    %494 = vmatprep.subr.bf16.mxu0 0
    %495 = vmatpush1.bf16.msra.mxu0 0
    %496 = vmatprep.subr.bf16.mxu0 0
    %497 = vmatpush1.bf16.msra.mxu0 0
    %498 = vmatprep.subr.bf16.mxu0 0
    %499 = vmatpush1.bf16.msra.mxu0 0
    %500 = vmatprep.subr.bf16.mxu0 0
    %501 = vmatpush1.bf16.msra.mxu0 0
    %502 = vmatprep.mubr.bf16.mxu0 0
    %503 = vmatmul.mubr.bf16.gmra.mrb[0].mxu0 %v462
    %v504 = vpop.f32.mrb[0].mxu0
    %v505 = vadd.f32 0.0, %v504
    %v506 = vpop.f32.mrb[0].mxu0
    %v507 = vpop.f32.mrb[0].mxu0
    %v508 = vadd.f32 0.0, %v507
    %v509 = vpop.f32.mrb[0].mxu0
    %510 = vmatprep.mubr.bf16.mxu0 0
    %511 = vmatmul.mubr.bf16.gmra.mrb[0].mxu0 %v465
    %v512 = vpop.f32.mrb[0].mxu0
    %v513 = vadd.f32 0.0, %v512
    %v514 = vpop.f32.mrb[0].mxu0
    %v515 = vpop.f32.mrb[0].mxu0
    %v516 = vpop.f32.mrb[0].mxu0
    %517 = vdwg.mxu0
    %518 = vrot.lane.b32.xlu0 %v505, 1
    %v519 = vpop.permute.xlu0 %518
    %v520 = vmul.f32 %v519, %v211
    %v521 = vadd.f32 %v508, %v520
    %522 = vrot.lane.b32.xlu0 %v513, 127
    %v523 = vpop.permute.xlu0 %522
    %v524 = vmul.f32 %v523, %v214
    %v525 = vadd.f32 %v521, %v524
    %526 = vst [vmem:[#allocation2 + $0x28] sm:$0xff] %v525
    %v527 = vld [vmem:[%s3 + $0x48] sm:$0xf]
    %v528 = vld [vmem:[%s3 + $0x4c] sm:$0xf]
    %v529 = vld [vmem:[%s3 + $0x50] sm:$0xf]
    %v530 = vld [vmem:[#allocation2] sm:$0xff]
    %v531 = vld [vmem:[#allocation2 + $0x8] sm:$0xff]
    %v532 = vld [vmem:[#allocation2 + $0x10] sm:$0xff]
    %v533 = vld [vmem:[#allocation2 + $0x18] sm:$0xff]
    %v534 = vld [vmem:[#allocation2 + $0x20] sm:$0xff]
    %v535 = vld [vmem:[#allocation2 + $0x28] sm:$0xff]
    %536 = vset.pattern.permute.xlu0 2
    %537 = vperm.xlu0 %536, %v34
    %v538 = vpop.permute.xlu0 %537
    %540 = vset.pattern.permute.xlu0 2
    %541 = vperm.xlu0 %540, %v35
    %v542 = vpop.permute.xlu0 %541
    %544 = vset.pattern.permute.xlu0 2
    %545 = vperm.xlu0 %544, %v36
    %v546 = vpop.permute.xlu0 %545
    %548 = vset.pattern.permute.xlu0 2
    %549 = vperm.xlu0 %548, %v37
    %v550 = vpop.permute.xlu0 %549
    %552 = vset.pattern.permute.xlu0 2
    %553 = vperm.xlu0 %552, %v38
    %v554 = vpop.permute.xlu0 %553
    %557 = vset.pattern.permute.xlu0 2
    %558 = vperm.xlu0 %557, %v39
    %v559 = vpop.permute.xlu0 %558
    %v561 = vmul.f32 %v530, %v538
    %v562 = vmul.f32 %v531, %v542
    %v563 = vmul.f32 %v532, %v546
    %v564 = vmul.f32 %v533, %v550
    %v565 = vmul.f32 %v534, %v554
    %v566 = vmul.f32 %v535, %v559
    %567 = vset.pattern.permute.xlu0 2
    %568 = vperm.xlu0 %567, %v41
    %v569 = vpop.permute.xlu0 %568
    %571 = vset.pattern.permute.xlu0 2
    %572 = vperm.xlu0 %571, %v42
    %v573 = vpop.permute.xlu0 %572
    %575 = vset.pattern.permute.xlu0 2
    %576 = vperm.xlu0 %575, %v43
    %v577 = vpop.permute.xlu0 %576
    %579 = vset.pattern.permute.xlu0 2
    %580 = vperm.xlu0 %579, %v44
    %v581 = vpop.permute.xlu0 %580
    %583 = vset.pattern.permute.xlu0 2
    %584 = vperm.xlu0 %583, %v45
    %v585 = vpop.permute.xlu0 %584
    %588 = vset.pattern.permute.xlu0 2
    %589 = vperm.xlu0 %588, %v46
    %v590 = vpop.permute.xlu0 %589
    %v592 = vadd.f32 %v561, %v569
    %v593 = vadd.f32 %v562, %v573
    %v594 = vadd.f32 %v563, %v577
    %v595 = vadd.f32 %v564, %v581
    %v596 = vadd.f32 %v565, %v585
    %v597 = vadd.f32 %v566, %v590
    %v598 = vmax.f32 %v592, 0.0
    %v599 = vmax.f32 %v593, 0.0
    %v600 = vmax.f32 %v594, 0.0
    %v601 = vmax.f32 %v595, 0.0
    %v602 = vmax.f32 %v596, 0.0
    %v603 = vmax.f32 %v597, 0.0
    %v604 = vpack.c.bf16 %v599, %v598
    %v605 = vpack.c.bf16 %v601, %v600
    %v606 = vpack.c.bf16 %v603, %v602
    %v610 = vunpack.c.l.b16 %v527
    %v611 = vunpack.c.l.b16 %v528
    %v612 = vunpack.c.l.b16 %v529
    %v613 = vpack.c.b16 %v611, %v610
    %v614 = vpack.c.b16 %v612, %v612
    %vm615 = vcmask 392192
    %v617 = vsel %vm615, %v613, 0
    %v620 = vsel %vm615, %v614, 0
    %622 = vmatprep.subr.bf16.mxu0 0
    %623 = vmatpush1.bf16.msra.mxu0 %v604
    %624 = vmatprep.subr.bf16.mxu0 0
    %625 = vmatpush1.bf16.msra.mxu0 %v605
    %626 = vmatprep.subr.bf16.mxu0 0
    %627 = vmatpush1.bf16.msra.mxu0 %v606
    %628 = vmatprep.subr.bf16.mxu0 0
    %629 = vmatpush1.bf16.msra.mxu0 0
    %630 = vmatprep.subr.bf16.mxu0 0
    %631 = vmatpush1.bf16.msra.mxu0 0
    %632 = vmatprep.subr.bf16.mxu0 0
    %633 = vmatpush1.bf16.msra.mxu0 0
    %634 = vmatprep.subr.bf16.mxu0 0
    %635 = vmatpush1.bf16.msra.mxu0 0
    %636 = vmatprep.subr.bf16.mxu0 0
    %637 = vmatpush1.bf16.msra.mxu0 0
    %638 = vmatprep.subr.bf16.mxu0 0
    %639 = vmatpush1.bf16.msra.mxu0 0
    %640 = vmatprep.subr.bf16.mxu0 0
    %641 = vmatpush1.bf16.msra.mxu0 0
    %642 = vmatprep.subr.bf16.mxu0 0
    %643 = vmatpush1.bf16.msra.mxu0 0
    %644 = vmatprep.subr.bf16.mxu0 0
    %645 = vmatpush1.bf16.msra.mxu0 0
    %646 = vmatprep.subr.bf16.mxu0 0
    %647 = vmatpush1.bf16.msra.mxu0 0
    %648 = vmatprep.subr.bf16.mxu0 0
    %649 = vmatpush1.bf16.msra.mxu0 0
    %650 = vmatprep.subr.bf16.mxu0 0
    %651 = vmatpush1.bf16.msra.mxu0 0
    %652 = vmatprep.subr.bf16.mxu0 0
    %653 = vmatpush1.bf16.msra.mxu0 0
    %654 = vmatprep.mubr.bf16.mxu0 0
    %655 = vmatmul.mubr.bf16.gmra.mrb[0].mxu0 %v617
    %v656 = vpop.f32.mrb[0].mxu0
    %v657 = vadd.f32 0.0, %v656
    %v658 = vpop.f32.mrb[0].mxu0
    %v659 = vpop.f32.mrb[0].mxu0
    %v660 = vadd.f32 0.0, %v659
    %v661 = vpop.f32.mrb[0].mxu0
    %662 = vmatprep.mubr.bf16.mxu0 0
    %663 = vmatmul.mubr.bf16.gmra.mrb[0].mxu0 %v620
    %v664 = vpop.f32.mrb[0].mxu0
    %v665 = vadd.f32 0.0, %v664
    %v666 = vpop.f32.mrb[0].mxu0
    %v667 = vpop.f32.mrb[0].mxu0
    %v668 = vpop.f32.mrb[0].mxu0
    %669 = vdwg.mxu0
    %670 = vrot.lane.b32.xlu0 %v657, 1
    %v671 = vpop.permute.xlu0 %670
    %v672 = vmul.f32 %v671, %v211
    %v673 = vadd.f32 %v660, %v672
    %674 = vrot.lane.b32.xlu0 %v665, 127
    %v675 = vpop.permute.xlu0 %674
    %v676 = vmul.f32 %v675, %v214
    %v677 = vadd.f32 %v673, %v676
    %678 = vst [vmem:[#allocation2 + $0x30] sm:$0xff] %v677
    %v679 = vld [vmem:[%s3 + $0x54] sm:$0xf]
    %v680 = vld [vmem:[%s3 + $0x58] sm:$0xf]
    %v681 = vld [vmem:[%s3 + $0x5c] sm:$0xf]
    %v682 = vld [vmem:[%s3 + $0x60] sm:$0xf]
    %v683 = vld [vmem:[#allocation2] sm:$0xff]
    %v684 = vld [vmem:[#allocation2 + $0x8] sm:$0xff]
    %v685 = vld [vmem:[#allocation2 + $0x10] sm:$0xff]
    %v686 = vld [vmem:[#allocation2 + $0x18] sm:$0xff]
    %v687 = vld [vmem:[#allocation2 + $0x20] sm:$0xff]
    %v688 = vld [vmem:[#allocation2 + $0x28] sm:$0xff]
    %v689 = vld [vmem:[#allocation2 + $0x30] sm:$0xff]
    %690 = vset.pattern.permute.xlu0 3
    %691 = vperm.xlu0 %690, %v34
    %v692 = vpop.permute.xlu0 %691
    %694 = vset.pattern.permute.xlu0 3
    %695 = vperm.xlu0 %694, %v35
    %v696 = vpop.permute.xlu0 %695
    %698 = vset.pattern.permute.xlu0 3
    %699 = vperm.xlu0 %698, %v36
    %v700 = vpop.permute.xlu0 %699
    %702 = vset.pattern.permute.xlu0 3
    %703 = vperm.xlu0 %702, %v37
    %v704 = vpop.permute.xlu0 %703
    %706 = vset.pattern.permute.xlu0 3
    %707 = vperm.xlu0 %706, %v38
    %v708 = vpop.permute.xlu0 %707
    %710 = vset.pattern.permute.xlu0 3
    %711 = vperm.xlu0 %710, %v39
    %v712 = vpop.permute.xlu0 %711
    %715 = vset.pattern.permute.xlu0 3
    %716 = vperm.xlu0 %715, %v40
    %v717 = vpop.permute.xlu0 %716
    %v719 = vmul.f32 %v683, %v692
    %v720 = vmul.f32 %v684, %v696
    %v721 = vmul.f32 %v685, %v700
    %v722 = vmul.f32 %v686, %v704
    %v723 = vmul.f32 %v687, %v708
    %v724 = vmul.f32 %v688, %v712
    %v725 = vmul.f32 %v689, %v717
    %726 = vset.pattern.permute.xlu0 3
    %727 = vperm.xlu0 %726, %v41
    %v728 = vpop.permute.xlu0 %727
    %730 = vset.pattern.permute.xlu0 3
    %731 = vperm.xlu0 %730, %v42
    %v732 = vpop.permute.xlu0 %731
    %734 = vset.pattern.permute.xlu0 3
    %735 = vperm.xlu0 %734, %v43
    %v736 = vpop.permute.xlu0 %735
    %738 = vset.pattern.permute.xlu0 3
    %739 = vperm.xlu0 %738, %v44
    %v740 = vpop.permute.xlu0 %739
    %742 = vset.pattern.permute.xlu0 3
    %743 = vperm.xlu0 %742, %v45
    %v744 = vpop.permute.xlu0 %743
    %746 = vset.pattern.permute.xlu0 3
    %747 = vperm.xlu0 %746, %v46
    %v748 = vpop.permute.xlu0 %747
    %751 = vset.pattern.permute.xlu0 3
    %752 = vperm.xlu0 %751, %v47
    %v753 = vpop.permute.xlu0 %752
    %v755 = vadd.f32 %v719, %v728
    %v756 = vadd.f32 %v720, %v732
    %v757 = vadd.f32 %v721, %v736
    %v758 = vadd.f32 %v722, %v740
    %v759 = vadd.f32 %v723, %v744
    %v760 = vadd.f32 %v724, %v748
    %v761 = vadd.f32 %v725, %v753
    %v762 = vmax.f32 %v755, 0.0
    %v763 = vmax.f32 %v756, 0.0
    %v764 = vmax.f32 %v757, 0.0
    %v765 = vmax.f32 %v758, 0.0
    %v766 = vmax.f32 %v759, 0.0
    %v767 = vmax.f32 %v760, 0.0
    %v768 = vmax.f32 %v761, 0.0
    %v769 = vpack.c.bf16 %v763, %v762
    %v770 = vpack.c.bf16 %v765, %v764
    %v771 = vpack.c.bf16 %v767, %v766
    %v772 = vpack.c.bf16 %v768, %v768
    %v777 = vunpack.c.l.b16 %v679
    %v778 = vunpack.c.l.b16 %v680
    %v779 = vunpack.c.l.b16 %v681
    %v780 = vunpack.c.l.b16 %v682
    %v781 = vpack.c.b16 %v778, %v777
    %v782 = vpack.c.b16 %v780, %v779
    %vm783 = vcmask 457728
    %v785 = vsel %vm783, %v781, 0
    %v788 = vsel %vm783, %v782, 0
    %v791 = vsel %vm110, %v772, 0
    %793 = vmatprep.subr.bf16.mxu0 0
    %794 = vmatpush1.bf16.msra.mxu0 %v769
    %795 = vmatprep.subr.bf16.mxu0 0
    %796 = vmatpush1.bf16.msra.mxu0 %v770
    %797 = vmatprep.subr.bf16.mxu0 0
    %798 = vmatpush1.bf16.msra.mxu0 %v771
    %799 = vmatprep.subr.bf16.mxu0 0
    %800 = vmatpush1.bf16.msra.mxu0 %v791
    %801 = vmatprep.subr.bf16.mxu0 0
    %802 = vmatpush1.bf16.msra.mxu0 0
    %803 = vmatprep.subr.bf16.mxu0 0
    %804 = vmatpush1.bf16.msra.mxu0 0
    %805 = vmatprep.subr.bf16.mxu0 0
    %806 = vmatpush1.bf16.msra.mxu0 0
    %807 = vmatprep.subr.bf16.mxu0 0
    %808 = vmatpush1.bf16.msra.mxu0 0
    %809 = vmatprep.subr.bf16.mxu0 0
    %810 = vmatpush1.bf16.msra.mxu0 0
    %811 = vmatprep.subr.bf16.mxu0 0
    %812 = vmatpush1.bf16.msra.mxu0 0
    %813 = vmatprep.subr.bf16.mxu0 0
    %814 = vmatpush1.bf16.msra.mxu0 0
    %815 = vmatprep.subr.bf16.mxu0 0
    %816 = vmatpush1.bf16.msra.mxu0 0
    %817 = vmatprep.subr.bf16.mxu0 0
    %818 = vmatpush1.bf16.msra.mxu0 0
    %819 = vmatprep.subr.bf16.mxu0 0
    %820 = vmatpush1.bf16.msra.mxu0 0
    %821 = vmatprep.subr.bf16.mxu0 0
    %822 = vmatpush1.bf16.msra.mxu0 0
    %823 = vmatprep.subr.bf16.mxu0 0
    %824 = vmatpush1.bf16.msra.mxu0 0
    %825 = vmatprep.mubr.bf16.mxu0 0
    %826 = vmatmul.mubr.bf16.gmra.mrb[0].mxu0 %v785
    %v827 = vpop.f32.mrb[0].mxu0
    %v828 = vadd.f32 0.0, %v827
    %v829 = vpop.f32.mrb[0].mxu0
    %v830 = vpop.f32.mrb[0].mxu0
    %v831 = vadd.f32 0.0, %v830
    %v832 = vpop.f32.mrb[0].mxu0
    %833 = vmatprep.mubr.bf16.mxu0 0
    %834 = vmatmul.mubr.bf16.gmra.mrb[0].mxu0 %v788
    %v835 = vpop.f32.mrb[0].mxu0
    %v836 = vadd.f32 0.0, %v835
    %v837 = vpop.f32.mrb[0].mxu0
    %v838 = vpop.f32.mrb[0].mxu0
    %v839 = vadd.f32 0.0, %v838
    %v840 = vpop.f32.mrb[0].mxu0
    %841 = vdwg.mxu0
    %v842 = vpack.c.bf16 %v831, %v828
    %v843 = vpack.c.bf16 %v839, %v836
    %v844 = vld [vmem:[%s8] sm:$0xf]
    %v845 = vld [vmem:[%s8 + $0x4] sm:$0xf]
    %v846 = vld [vmem:[%s8 + $0x8] sm:$0xf]
    %v847 = vld [vmem:[%s8 + $0xc] sm:$0xf]
    %v848 = vld [vmem:[%s8 + $0x10] sm:$0xf]
    %v849 = vld [vmem:[%s8 + $0x14] sm:$0xf]
    %v850 = vld [vmem:[%s8 + $0x18] sm:$0xf]
    %v851 = vld [vmem:[%s8 + $0x1c] sm:$0xf]
    %v852 = vld [vmem:[%s8 + $0x20] sm:$0xf]
    %v853 = vld [vmem:[%s8 + $0x24] sm:$0xf]
    %v854 = vld [vmem:[%s8 + $0x28] sm:$0xf]
    %v855 = vld [vmem:[%s8 + $0x2c] sm:$0xf]
    %v856 = vld [vmem:[%s8 + $0x30] sm:$0xf]
    %v857 = vld [vmem:[%s8 + $0x34] sm:$0xf]
    %v858 = vld [vmem:[%s8 + $0x38] sm:$0xf]
    %v859 = vld [vmem:[%s8 + $0x3c] sm:$0xf]
    %v876 = vunpack.c.l.b16 %v844
    %v877 = vunpack.c.l.b16 %v845
    %v878 = vunpack.c.l.b16 %v846
    %v879 = vunpack.c.l.b16 %v847
    %v880 = vunpack.c.l.b16 %v848
    %v881 = vunpack.c.l.b16 %v849
    %v882 = vunpack.c.l.b16 %v850
    %v883 = vunpack.c.l.b16 %v851
    %v884 = vunpack.c.l.b16 %v852
    %v885 = vunpack.c.l.b16 %v853
    %v886 = vunpack.c.l.b16 %v854
    %v887 = vunpack.c.l.b16 %v855
    %v888 = vunpack.c.l.b16 %v856
    %v889 = vunpack.c.l.b16 %v857
    %v890 = vunpack.c.l.b16 %v858
    %v891 = vunpack.c.l.b16 %v859
    %v892 = vpack.c.b16 %v877, %v876
    %v893 = vpack.c.b16 %v879, %v878
    %v894 = vpack.c.b16 %v881, %v880
    %v895 = vpack.c.b16 %v883, %v882
    %v896 = vpack.c.b16 %v885, %v884
    %v897 = vpack.c.b16 %v887, %v886
    %v898 = vpack.c.b16 %v889, %v888
    %v899 = vpack.c.b16 %v891, %v890
    %908 = vmatprep.subr.bf16.mxu0 0
    %909 = vmatpush1.bf16.msra.mxu0 %v892
    %910 = vmatprep.subr.bf16.mxu0 0
    %911 = vmatpush1.bf16.msra.mxu0 %v893
    %912 = vmatprep.subr.bf16.mxu0 0
    %913 = vmatpush1.bf16.msra.mxu0 %v894
    %914 = vmatprep.subr.bf16.mxu0 0
    %915 = vmatpush1.bf16.msra.mxu0 %v895
    %916 = vmatprep.subr.bf16.mxu0 0
    %917 = vmatpush1.bf16.msra.mxu0 %v896
    %918 = vmatprep.subr.bf16.mxu0 0
    %919 = vmatpush1.bf16.msra.mxu0 %v897
    %920 = vmatprep.subr.bf16.mxu0 0
    %921 = vmatpush1.bf16.msra.mxu0 %v898
    %922 = vmatprep.subr.bf16.mxu0 0
    %923 = vmatpush1.bf16.msra.mxu0 %v899
    %924 = vmatprep.subr.bf16.mxu0 0
    %925 = vmatpush1.bf16.msra.mxu0 0
    %926 = vmatprep.subr.bf16.mxu0 0
    %927 = vmatpush1.bf16.msra.mxu0 0
    %928 = vmatprep.subr.bf16.mxu0 0
    %929 = vmatpush1.bf16.msra.mxu0 0
    %930 = vmatprep.subr.bf16.mxu0 0
    %931 = vmatpush1.bf16.msra.mxu0 0
    %932 = vmatprep.subr.bf16.mxu0 0
    %933 = vmatpush1.bf16.msra.mxu0 0
    %934 = vmatprep.subr.bf16.mxu0 0
    %935 = vmatpush1.bf16.msra.mxu0 0
    %936 = vmatprep.subr.bf16.mxu0 0
    %937 = vmatpush1.bf16.msra.mxu0 0
    %938 = vmatprep.subr.bf16.mxu0 0
    %939 = vmatpush1.bf16.msra.mxu0 0
    %940 = vmatprep.mubr.bf16.mxu0 0
    %941 = vmatmul.mubr.bf16.gmra.mrb[0].mxu0 %v842
    %v942 = vpop.f32.mrb[0].mxu0
    %v943 = vadd.f32 0.0, %v942
    %v944 = vpop.f32.mrb[0].mxu0
    %v945 = vpop.f32.mrb[0].mxu0
    %v946 = vadd.f32 0.0, %v945
    %v947 = vpop.f32.mrb[0].mxu0
    %948 = vmatprep.mubr.bf16.mxu0 0
    %949 = vmatmul.mubr.bf16.gmra.mrb[0].mxu0 %v843
    %v950 = vpop.f32.mrb[0].mxu0
    %v951 = vadd.f32 0.0, %v950
    %v952 = vpop.f32.mrb[0].mxu0
    %v953 = vpop.f32.mrb[0].mxu0
    %v954 = vadd.f32 0.0, %v953
    %v955 = vpop.f32.mrb[0].mxu0
    %956 = vdwg.mxu0
    %957 = vst [vmem:[#allocation3] sm:$0xff] %v943
    %958 = vst [vmem:[#allocation3 + $0x8] sm:$0xff] %v946
    %959 = vst [vmem:[#allocation3 + $0x10] sm:$0xff] %v951
    %960 = vst [vmem:[#allocation3 + $0x18] sm:$0xff] %v954
    %v961 = vld [vmem:[%s3 + $0x64] sm:$0xf]
    %v962 = vld [vmem:[%s3 + $0x68] sm:$0xf]
    %v963 = vld [vmem:[%s3 + $0x6c] sm:$0xf]
    %v964 = vld [vmem:[#allocation3] sm:$0xff]
    %v965 = vld [vmem:[#allocation3 + $0x8] sm:$0xff]
    %v966 = vld [vmem:[#allocation3 + $0x10] sm:$0xff]
    %v967 = vld [vmem:[#allocation3 + $0x18] sm:$0xff]
    %968 = vset.pattern.permute.xlu0 4
    %969 = vperm.xlu0 %968, %v34
    %v970 = vpop.permute.xlu0 %969
    %972 = vset.pattern.permute.xlu0 4
    %973 = vperm.xlu0 %972, %v35
    %v974 = vpop.permute.xlu0 %973
    %976 = vset.pattern.permute.xlu0 4
    %977 = vperm.xlu0 %976, %v36
    %v978 = vpop.permute.xlu0 %977
    %980 = vset.pattern.permute.xlu0 4
    %981 = vperm.xlu0 %980, %v37
    %v982 = vpop.permute.xlu0 %981
    %v984 = vmul.f32 %v964, %v970
    %v985 = vmul.f32 %v965, %v974
    %v986 = vmul.f32 %v966, %v978
    %v987 = vmul.f32 %v967, %v982
    %988 = vset.pattern.permute.xlu0 4
    %989 = vperm.xlu0 %988, %v41
    %v990 = vpop.permute.xlu0 %989
    %992 = vset.pattern.permute.xlu0 4
    %993 = vperm.xlu0 %992, %v42
    %v994 = vpop.permute.xlu0 %993
    %996 = vset.pattern.permute.xlu0 4
    %997 = vperm.xlu0 %996, %v43
    %v998 = vpop.permute.xlu0 %997
    %1000 = vset.pattern.permute.xlu0 4
    %1001 = vperm.xlu0 %1000, %v44
    %v1002 = vpop.permute.xlu0 %1001
    %v1004 = vadd.f32 %v984, %v990
    %v1005 = vadd.f32 %v985, %v994
    %v1006 = vadd.f32 %v986, %v998
    %v1007 = vadd.f32 %v987, %v1002
    %v1008 = vmax.f32 %v1004, 0.0
    %v1009 = vmax.f32 %v1005, 0.0
    %v1010 = vmax.f32 %v1006, 0.0
    %v1011 = vmax.f32 %v1007, 0.0
    %v1012 = vpack.c.bf16 %v1009, %v1008
    %v1013 = vpack.c.bf16 %v1011, %v1010
    %v1017 = vunpack.c.l.b16 %v961
    %v1018 = vunpack.c.l.b16 %v962
    %v1019 = vunpack.c.l.b16 %v963
    %v1020 = vpack.c.b16 %v1018, %v1017
    %v1021 = vpack.c.b16 %v1019, %v1019
    %v1023 = vsel %vm320, %v1020, 0
    %v1026 = vsel %vm320, %v1021, 0
    %1028 = vmatprep.subr.bf16.mxu0 0
    %1029 = vmatpush1.bf16.msra.mxu0 %v1012
    %1030 = vmatprep.subr.bf16.mxu0 0
    %1031 = vmatpush1.bf16.msra.mxu0 %v1013
    %1032 = vmatprep.subr.bf16.mxu0 0
    %1033 = vmatpush1.bf16.msra.mxu0 0
    %1034 = vmatprep.subr.bf16.mxu0 0
    %1035 = vmatpush1.bf16.msra.mxu0 0
    %1036 = vmatprep.subr.bf16.mxu0 0
    %1037 = vmatpush1.bf16.msra.mxu0 0
    %1038 = vmatprep.subr.bf16.mxu0 0
    %1039 = vmatpush1.bf16.msra.mxu0 0
    %1040 = vmatprep.subr.bf16.mxu0 0
    %1041 = vmatpush1.bf16.msra.mxu0 0
    %1042 = vmatprep.subr.bf16.mxu0 0
    %1043 = vmatpush1.bf16.msra.mxu0 0
    %1044 = vmatprep.subr.bf16.mxu0 0
    %1045 = vmatpush1.bf16.msra.mxu0 0
    %1046 = vmatprep.subr.bf16.mxu0 0
    %1047 = vmatpush1.bf16.msra.mxu0 0
    %1048 = vmatprep.subr.bf16.mxu0 0
    %1049 = vmatpush1.bf16.msra.mxu0 0
    %1050 = vmatprep.subr.bf16.mxu0 0
    %1051 = vmatpush1.bf16.msra.mxu0 0
    %1052 = vmatprep.subr.bf16.mxu0 0
    %1053 = vmatpush1.bf16.msra.mxu0 0
    %1054 = vmatprep.subr.bf16.mxu0 0
    %1055 = vmatpush1.bf16.msra.mxu0 0
    %1056 = vmatprep.subr.bf16.mxu0 0
    %1057 = vmatpush1.bf16.msra.mxu0 0
    %1058 = vmatprep.subr.bf16.mxu0 0
    %1059 = vmatpush1.bf16.msra.mxu0 0
    %1060 = vmatprep.mubr.bf16.mxu0 0
    %1061 = vmatmul.mubr.bf16.gmra.mrb[0].mxu0 %v1023
    %v1062 = vpop.f32.mrb[0].mxu0
    %v1063 = vadd.f32 0.0, %v1062
    %v1064 = vpop.f32.mrb[0].mxu0
    %v1065 = vpop.f32.mrb[0].mxu0
    %v1066 = vadd.f32 0.0, %v1065
    %v1067 = vpop.f32.mrb[0].mxu0
    %1068 = vmatprep.mubr.bf16.mxu0 0
    %1069 = vmatmul.mubr.bf16.gmra.mrb[0].mxu0 %v1026
    %v1070 = vpop.f32.mrb[0].mxu0
    %v1071 = vadd.f32 0.0, %v1070
    %v1072 = vpop.f32.mrb[0].mxu0
    %v1073 = vpop.f32.mrb[0].mxu0
    %v1074 = vpop.f32.mrb[0].mxu0
    %1075 = vdwg.mxu0
    %vm1076 = vcmp.lt.s32.totalorder %v196, 0
    %v1077 = vsub.s32 0, %v196
    %v1078 = vsel %vm1076, %v1077, %v196
    %v1079 = vshrl.u32 %v1078, 3
    %v1080 = vand.u32 %v1078, 7
    %v1081 = vsub.s32 0, %v1080
    %v1082 = vsel %vm1076, %v1081, %v1080
    %vm1083 = vcmp.ne.s32.totalorder %v1082, 0
    %vm1084 = vcmp.lt.s32.totalorder %v1082, 0
    %vm1085 = vmand %vm1084, %vm1083
    %v1086 = vadd.s32 %v1082, 8
    %v1087 = vsel %vm1085, %v1086, %v1082
    %vm1088 = vcmp.ne.s32.totalorder %v1087, 0
    %v1089 = vsel %vm1088, 1, 0
    %v1090 = vcvt.s32.f32 %v1089
    %vm1091 = vcmp.ne.s32.totalorder %v1087, 7
    %v1092 = vsel %vm1091, 1, 0
    %v1093 = vcvt.s32.f32 %v1092
    %1094 = vrot.lane.b32.xlu0 %v1063, 1
    %v1095 = vpop.permute.xlu0 %1094
    %v1096 = vmul.f32 %v1095, %v1090
    %v1097 = vadd.f32 %v1066, %v1096
    %1098 = vrot.lane.b32.xlu0 %v1071, 127
    %v1099 = vpop.permute.xlu0 %1098
    %v1100 = vmul.f32 %v1099, %v1093
    %v1101 = vadd.f32 %v1097, %v1100
    %1102 = vst [vmem:[#allocation3 + $0x20] sm:$0xff] %v1101
    %v1103 = vld [vmem:[%s3 + $0x70] sm:$0xf]
    %v1104 = vld [vmem:[%s3 + $0x74] sm:$0xf]
    %v1105 = vld [vmem:[%s3 + $0x78] sm:$0xf]
    %v1106 = vld [vmem:[#allocation3] sm:$0xff]
    %v1107 = vld [vmem:[#allocation3 + $0x8] sm:$0xff]
    %v1108 = vld [vmem:[#allocation3 + $0x10] sm:$0xff]
    %v1109 = vld [vmem:[#allocation3 + $0x18] sm:$0xff]
    %v1110 = vld [vmem:[#allocation3 + $0x20] sm:$0xff]
    %1111 = vset.pattern.permute.xlu0 5
    %1112 = vperm.xlu0 %1111, %v34
    %v1113 = vpop.permute.xlu0 %1112
    %1115 = vset.pattern.permute.xlu0 5
    %1116 = vperm.xlu0 %1115, %v35
    %v1117 = vpop.permute.xlu0 %1116
    %1119 = vset.pattern.permute.xlu0 5
    %1120 = vperm.xlu0 %1119, %v36
    %v1121 = vpop.permute.xlu0 %1120
    %1123 = vset.pattern.permute.xlu0 5
    %1124 = vperm.xlu0 %1123, %v37
    %v1125 = vpop.permute.xlu0 %1124
    %1127 = vset.pattern.permute.xlu0 5
    %1128 = vperm.xlu0 %1127, %v38
    %v1129 = vpop.permute.xlu0 %1128
    %v1131 = vmul.f32 %v1106, %v1113
    %v1132 = vmul.f32 %v1107, %v1117
    %v1133 = vmul.f32 %v1108, %v1121
    %v1134 = vmul.f32 %v1109, %v1125
    %v1135 = vmul.f32 %v1110, %v1129
    %1136 = vset.pattern.permute.xlu0 5
    %1137 = vperm.xlu0 %1136, %v41
    %v1138 = vpop.permute.xlu0 %1137
    %1140 = vset.pattern.permute.xlu0 5
    %1141 = vperm.xlu0 %1140, %v42
    %v1142 = vpop.permute.xlu0 %1141
    %1144 = vset.pattern.permute.xlu0 5
    %1145 = vperm.xlu0 %1144, %v43
    %v1146 = vpop.permute.xlu0 %1145
    %1148 = vset.pattern.permute.xlu0 5
    %1149 = vperm.xlu0 %1148, %v44
    %v1150 = vpop.permute.xlu0 %1149
    %1152 = vset.pattern.permute.xlu0 5
    %1153 = vperm.xlu0 %1152, %v45
    %v1154 = vpop.permute.xlu0 %1153
    %v1156 = vadd.f32 %v1131, %v1138
    %v1157 = vadd.f32 %v1132, %v1142
    %v1158 = vadd.f32 %v1133, %v1146
    %v1159 = vadd.f32 %v1134, %v1150
    %v1160 = vadd.f32 %v1135, %v1154
    %v1161 = vmax.f32 %v1156, 0.0
    %v1162 = vmax.f32 %v1157, 0.0
    %v1163 = vmax.f32 %v1158, 0.0
    %v1164 = vmax.f32 %v1159, 0.0
    %v1165 = vmax.f32 %v1160, 0.0
    %v1166 = vpack.c.bf16 %v1162, %v1161
    %v1167 = vpack.c.bf16 %v1164, %v1163
    %v1168 = vpack.c.bf16 %v1165, %v1165
    %v1172 = vunpack.c.l.b16 %v1103
    %v1173 = vunpack.c.l.b16 %v1104
    %v1174 = vunpack.c.l.b16 %v1105
    %v1175 = vpack.c.b16 %v1173, %v1172
    %v1176 = vpack.c.b16 %v1174, %v1174
    %v1178 = vsel %vm460, %v1175, 0
    %v1181 = vsel %vm460, %v1176, 0
    %v1184 = vsel %vm110, %v1168, 0
    %1186 = vmatprep.subr.bf16.mxu0 0
    %1187 = vmatpush1.bf16.msra.mxu0 %v1166
    %1188 = vmatprep.subr.bf16.mxu0 0
    %1189 = vmatpush1.bf16.msra.mxu0 %v1167
    %1190 = vmatprep.subr.bf16.mxu0 0
    %1191 = vmatpush1.bf16.msra.mxu0 %v1184
    %1192 = vmatprep.subr.bf16.mxu0 0
    %1193 = vmatpush1.bf16.msra.mxu0 0
    %1194 = vmatprep.subr.bf16.mxu0 0
    %1195 = vmatpush1.bf16.msra.mxu0 0
    %1196 = vmatprep.subr.bf16.mxu0 0
    %1197 = vmatpush1.bf16.msra.mxu0 0
    %1198 = vmatprep.subr.bf16.mxu0 0
    %1199 = vmatpush1.bf16.msra.mxu0 0
    %1200 = vmatprep.subr.bf16.mxu0 0
    %1201 = vmatpush1.bf16.msra.mxu0 0
    %1202 = vmatprep.subr.bf16.mxu0 0
    %1203 = vmatpush1.bf16.msra.mxu0 0
    %1204 = vmatprep.subr.bf16.mxu0 0
    %1205 = vmatpush1.bf16.msra.mxu0 0
    %1206 = vmatprep.subr.bf16.mxu0 0
    %1207 = vmatpush1.bf16.msra.mxu0 0
    %1208 = vmatprep.subr.bf16.mxu0 0
    %1209 = vmatpush1.bf16.msra.mxu0 0
    %1210 = vmatprep.subr.bf16.mxu0 0
    %1211 = vmatpush1.bf16.msra.mxu0 0
    %1212 = vmatprep.subr.bf16.mxu0 0
    %1213 = vmatpush1.bf16.msra.mxu0 0
    %1214 = vmatprep.subr.bf16.mxu0 0
    %1215 = vmatpush1.bf16.msra.mxu0 0
    %1216 = vmatprep.subr.bf16.mxu0 0
    %1217 = vmatpush1.bf16.msra.mxu0 0
    %1218 = vmatprep.mubr.bf16.mxu0 0
    %1219 = vmatmul.mubr.bf16.gmra.mrb[0].mxu0 %v1178
    %v1220 = vpop.f32.mrb[0].mxu0
    %v1221 = vadd.f32 0.0, %v1220
    %v1222 = vpop.f32.mrb[0].mxu0
    %v1223 = vpop.f32.mrb[0].mxu0
    %v1224 = vadd.f32 0.0, %v1223
    %v1225 = vpop.f32.mrb[0].mxu0
    %1226 = vmatprep.mubr.bf16.mxu0 0
    %1227 = vmatmul.mubr.bf16.gmra.mrb[0].mxu0 %v1181
    %v1228 = vpop.f32.mrb[0].mxu0
    %v1229 = vadd.f32 0.0, %v1228
    %v1230 = vpop.f32.mrb[0].mxu0
    %v1231 = vpop.f32.mrb[0].mxu0
    %v1232 = vpop.f32.mrb[0].mxu0
    %1233 = vdwg.mxu0
    %1234 = vrot.lane.b32.xlu0 %v1221, 1
    %v1235 = vpop.permute.xlu0 %1234
    %v1236 = vmul.f32 %v1235, %v1090
    %v1237 = vadd.f32 %v1224, %v1236
    %1238 = vrot.lane.b32.xlu0 %v1229, 127
    %v1239 = vpop.permute.xlu0 %1238
    %v1240 = vmul.f32 %v1239, %v1093
    %v1241 = vadd.f32 %v1237, %v1240
    %1242 = vst [vmem:[#allocation3 + $0x28] sm:$0xff] %v1241
    %v1243 = vld [vmem:[%s3 + $0x7c] sm:$0xf]
    %v1244 = vld [vmem:[%s3 + $0x80] sm:$0xf]
    %v1245 = vld [vmem:[%s3 + $0x84] sm:$0xf]
    %v1246 = vld [vmem:[#allocation3] sm:$0xff]
    %v1247 = vld [vmem:[#allocation3 + $0x8] sm:$0xff]
    %v1248 = vld [vmem:[#allocation3 + $0x10] sm:$0xff]
    %v1249 = vld [vmem:[#allocation3 + $0x18] sm:$0xff]
    %v1250 = vld [vmem:[#allocation3 + $0x20] sm:$0xff]
    %v1251 = vld [vmem:[#allocation3 + $0x28] sm:$0xff]
    %1252 = vset.pattern.permute.xlu0 6
    %1253 = vperm.xlu0 %1252, %v34
    %v1254 = vpop.permute.xlu0 %1253
    %1256 = vset.pattern.permute.xlu0 6
    %1257 = vperm.xlu0 %1256, %v35
    %v1258 = vpop.permute.xlu0 %1257
    %1260 = vset.pattern.permute.xlu0 6
    %1261 = vperm.xlu0 %1260, %v36
    %v1262 = vpop.permute.xlu0 %1261
    %1264 = vset.pattern.permute.xlu0 6
    %1265 = vperm.xlu0 %1264, %v37
    %v1266 = vpop.permute.xlu0 %1265
    %1268 = vset.pattern.permute.xlu0 6
    %1269 = vperm.xlu0 %1268, %v38
    %v1270 = vpop.permute.xlu0 %1269
    %1272 = vset.pattern.permute.xlu0 6
    %1273 = vperm.xlu0 %1272, %v39
    %v1274 = vpop.permute.xlu0 %1273
    %v1276 = vmul.f32 %v1246, %v1254
    %v1277 = vmul.f32 %v1247, %v1258
    %v1278 = vmul.f32 %v1248, %v1262
    %v1279 = vmul.f32 %v1249, %v1266
    %v1280 = vmul.f32 %v1250, %v1270
    %v1281 = vmul.f32 %v1251, %v1274
    %1282 = vset.pattern.permute.xlu0 6
    %1283 = vperm.xlu0 %1282, %v41
    %v1284 = vpop.permute.xlu0 %1283
    %1286 = vset.pattern.permute.xlu0 6
    %1287 = vperm.xlu0 %1286, %v42
    %v1288 = vpop.permute.xlu0 %1287
    %1290 = vset.pattern.permute.xlu0 6
    %1291 = vperm.xlu0 %1290, %v43
    %v1292 = vpop.permute.xlu0 %1291
    %1294 = vset.pattern.permute.xlu0 6
    %1295 = vperm.xlu0 %1294, %v44
    %v1296 = vpop.permute.xlu0 %1295
    %1298 = vset.pattern.permute.xlu0 6
    %1299 = vperm.xlu0 %1298, %v45
    %v1300 = vpop.permute.xlu0 %1299
    %1302 = vset.pattern.permute.xlu0 6
    %1303 = vperm.xlu0 %1302, %v46
    %v1304 = vpop.permute.xlu0 %1303
    %v1306 = vadd.f32 %v1276, %v1284
    %v1307 = vadd.f32 %v1277, %v1288
    %v1308 = vadd.f32 %v1278, %v1292
    %v1309 = vadd.f32 %v1279, %v1296
    %v1310 = vadd.f32 %v1280, %v1300
    %v1311 = vadd.f32 %v1281, %v1304
    %v1312 = vmax.f32 %v1306, 0.0
    %v1313 = vmax.f32 %v1307, 0.0
    %v1314 = vmax.f32 %v1308, 0.0
    %v1315 = vmax.f32 %v1309, 0.0
    %v1316 = vmax.f32 %v1310, 0.0
    %v1317 = vmax.f32 %v1311, 0.0
    %v1318 = vpack.c.bf16 %v1313, %v1312
    %v1319 = vpack.c.bf16 %v1315, %v1314
    %v1320 = vpack.c.bf16 %v1317, %v1316
    %v1324 = vunpack.c.l.b16 %v1243
    %v1325 = vunpack.c.l.b16 %v1244
    %v1326 = vunpack.c.l.b16 %v1245
    %v1327 = vpack.c.b16 %v1325, %v1324
    %v1328 = vpack.c.b16 %v1326, %v1326
    %v1330 = vsel %vm615, %v1327, 0
    %v1333 = vsel %vm615, %v1328, 0
    %1335 = vmatprep.subr.bf16.mxu0 0
    %1336 = vmatpush1.bf16.msra.mxu0 %v1318
    %1337 = vmatprep.subr.bf16.mxu0 0
    %1338 = vmatpush1.bf16.msra.mxu0 %v1319
    %1339 = vmatprep.subr.bf16.mxu0 0
    %1340 = vmatpush1.bf16.msra.mxu0 %v1320
    %1341 = vmatprep.subr.bf16.mxu0 0
    %1342 = vmatpush1.bf16.msra.mxu0 0
    %1343 = vmatprep.subr.bf16.mxu0 0
    %1344 = vmatpush1.bf16.msra.mxu0 0
    %1345 = vmatprep.subr.bf16.mxu0 0
    %1346 = vmatpush1.bf16.msra.mxu0 0
    %1347 = vmatprep.subr.bf16.mxu0 0
    %1348 = vmatpush1.bf16.msra.mxu0 0
    %1349 = vmatprep.subr.bf16.mxu0 0
    %1350 = vmatpush1.bf16.msra.mxu0 0
    %1351 = vmatprep.subr.bf16.mxu0 0
    %1352 = vmatpush1.bf16.msra.mxu0 0
    %1353 = vmatprep.subr.bf16.mxu0 0
    %1354 = vmatpush1.bf16.msra.mxu0 0
    %1355 = vmatprep.subr.bf16.mxu0 0
    %1356 = vmatpush1.bf16.msra.mxu0 0
    %1357 = vmatprep.subr.bf16.mxu0 0
    %1358 = vmatpush1.bf16.msra.mxu0 0
    %1359 = vmatprep.subr.bf16.mxu0 0
    %1360 = vmatpush1.bf16.msra.mxu0 0
    %1361 = vmatprep.subr.bf16.mxu0 0
    %1362 = vmatpush1.bf16.msra.mxu0 0
    %1363 = vmatprep.subr.bf16.mxu0 0
    %1364 = vmatpush1.bf16.msra.mxu0 0
    %1365 = vmatprep.subr.bf16.mxu0 0
    %1366 = vmatpush1.bf16.msra.mxu0 0
    %1367 = vmatprep.mubr.bf16.mxu0 0
    %1368 = vmatmul.mubr.bf16.gmra.mrb[0].mxu0 %v1330
    %v1369 = vpop.f32.mrb[0].mxu0
    %v1370 = vadd.f32 0.0, %v1369
    %v1371 = vpop.f32.mrb[0].mxu0
    %v1372 = vpop.f32.mrb[0].mxu0
    %v1373 = vadd.f32 0.0, %v1372
    %v1374 = vpop.f32.mrb[0].mxu0
    %1375 = vmatprep.mubr.bf16.mxu0 0
    %1376 = vmatmul.mubr.bf16.gmra.mrb[0].mxu0 %v1333
    %v1377 = vpop.f32.mrb[0].mxu0
    %v1378 = vadd.f32 0.0, %v1377
    %v1379 = vpop.f32.mrb[0].mxu0
    %v1380 = vpop.f32.mrb[0].mxu0
    %v1381 = vpop.f32.mrb[0].mxu0
    %1382 = vdwg.mxu0
    %1383 = vrot.lane.b32.xlu0 %v1370, 1
    %v1384 = vpop.permute.xlu0 %1383
    %v1385 = vmul.f32 %v1384, %v1090
    %v1386 = vadd.f32 %v1373, %v1385
    %1387 = vrot.lane.b32.xlu0 %v1378, 127
    %v1388 = vpop.permute.xlu0 %1387
    %v1389 = vmul.f32 %v1388, %v1093
    %v1390 = vadd.f32 %v1386, %v1389
    %1391 = vst [vmem:[#allocation3 + $0x30] sm:$0xff] %v1390
    %v1392 = vld [vmem:[#allocation3] sm:$0xff]
    %v1393 = vld [vmem:[#allocation3 + $0x8] sm:$0xff]
    %v1394 = vld [vmem:[#allocation3 + $0x10] sm:$0xff]
    %v1395 = vld [vmem:[#allocation3 + $0x18] sm:$0xff]
    %v1396 = vld [vmem:[#allocation3 + $0x20] sm:$0xff]
    %v1397 = vld [vmem:[#allocation3 + $0x28] sm:$0xff]
    %v1398 = vld [vmem:[#allocation3 + $0x30] sm:$0xff]
    %1399 = vset.pattern.permute.xlu0 7
    %1400 = vperm.xlu0 %1399, %v34
    %v1401 = vpop.permute.xlu0 %1400
    %1403 = vset.pattern.permute.xlu0 7
    %1404 = vperm.xlu0 %1403, %v35
    %v1405 = vpop.permute.xlu0 %1404
    %1407 = vset.pattern.permute.xlu0 7
    %1408 = vperm.xlu0 %1407, %v36
    %v1409 = vpop.permute.xlu0 %1408
    %1411 = vset.pattern.permute.xlu0 7
    %1412 = vperm.xlu0 %1411, %v37
    %v1413 = vpop.permute.xlu0 %1412
    %1415 = vset.pattern.permute.xlu0 7
    %1416 = vperm.xlu0 %1415, %v38
    %v1417 = vpop.permute.xlu0 %1416
    %1419 = vset.pattern.permute.xlu0 7
    %1420 = vperm.xlu0 %1419, %v39
    %v1421 = vpop.permute.xlu0 %1420
    %1423 = vset.pattern.permute.xlu0 7
    %1424 = vperm.xlu0 %1423, %v40
    %v1425 = vpop.permute.xlu0 %1424
    %v1427 = vmul.f32 %v1392, %v1401
    %v1428 = vmul.f32 %v1393, %v1405
    %v1429 = vmul.f32 %v1394, %v1409
    %v1430 = vmul.f32 %v1395, %v1413
    %v1431 = vmul.f32 %v1396, %v1417
    %v1432 = vmul.f32 %v1397, %v1421
    %v1433 = vmul.f32 %v1398, %v1425
    %1434 = vset.pattern.permute.xlu0 7
    %1435 = vperm.xlu0 %1434, %v41
    %v1436 = vpop.permute.xlu0 %1435
    %1438 = vset.pattern.permute.xlu0 7
    %1439 = vperm.xlu0 %1438, %v42
    %v1440 = vpop.permute.xlu0 %1439
    %1442 = vset.pattern.permute.xlu0 7
    %1443 = vperm.xlu0 %1442, %v43
    %v1444 = vpop.permute.xlu0 %1443
    %1446 = vset.pattern.permute.xlu0 7
    %1447 = vperm.xlu0 %1446, %v44
    %v1448 = vpop.permute.xlu0 %1447
    %1450 = vset.pattern.permute.xlu0 7
    %1451 = vperm.xlu0 %1450, %v45
    %v1452 = vpop.permute.xlu0 %1451
    %1454 = vset.pattern.permute.xlu0 7
    %1455 = vperm.xlu0 %1454, %v46
    %v1456 = vpop.permute.xlu0 %1455
    %1458 = vset.pattern.permute.xlu0 7
    %1459 = vperm.xlu0 %1458, %v47
    %v1460 = vpop.permute.xlu0 %1459
    %v1462 = vadd.f32 %v1427, %v1436
    %v1463 = vadd.f32 %v1428, %v1440
    %v1464 = vadd.f32 %v1429, %v1444
    %v1465 = vadd.f32 %v1430, %v1448
    %v1466 = vadd.f32 %v1431, %v1452
    %v1467 = vadd.f32 %v1432, %v1456
    %v1468 = vadd.f32 %v1433, %v1460
    %v1469 = vmax.f32 %v1462, 0.0
    %v1470 = vmax.f32 %v1463, 0.0
    %v1471 = vmax.f32 %v1464, 0.0
    %v1472 = vmax.f32 %v1465, 0.0
    %v1473 = vmax.f32 %v1466, 0.0
    %v1474 = vmax.f32 %v1467, 0.0
    %v1475 = vmax.f32 %v1468, 0.0
    %v1476 = vpack.c.bf16 %v1470, %v1469
    %v1477 = vpack.c.bf16 %v1472, %v1471
    %v1478 = vpack.c.bf16 %v1474, %v1473
    %v1479 = vpack.c.bf16 %v1475, %v1475
    %v1480 = vld [vmem:[%s6] sm:$0xf]
    %v1481 = vld [vmem:[%s6 + $0x4] sm:$0xf]
    %v1482 = vld [vmem:[%s6 + $0x8] sm:$0xf]
    %v1483 = vld [vmem:[%s6 + $0xc] sm:$0xf]
    %v1484 = vld [vmem:[%s6 + $0x10] sm:$0xf]
    %v1485 = vld [vmem:[%s6 + $0x14] sm:$0xf]
    %v1486 = vld [vmem:[%s6 + $0x18] sm:$0xf]
    %v1487 = vld [vmem:[%s6 + $0x1c] sm:$0xf]
    %v1488 = vld [vmem:[%s6 + $0x20] sm:$0xf]
    %v1489 = vld [vmem:[%s6 + $0x24] sm:$0xf]
    %v1490 = vld [vmem:[%s6 + $0x28] sm:$0xf]
    %v1491 = vld [vmem:[%s6 + $0x2c] sm:$0xf]
    %v1492 = vld [vmem:[%s6 + $0x30] sm:$0xf]
    %v1493 = vld [vmem:[%s6 + $0x34] sm:$0xf]
    %v1494 = vld [vmem:[%s6 + $0x38] sm:$0xf]
    %v1495 = vld [vmem:[%s6 + $0x3c] sm:$0xf]
    %v1512 = vunpack.c.l.b16 %v1480
    %v1513 = vunpack.c.l.b16 %v1481
    %v1514 = vunpack.c.l.b16 %v1482
    %v1515 = vunpack.c.l.b16 %v1483
    %v1516 = vunpack.c.l.b16 %v1484
    %v1517 = vunpack.c.l.b16 %v1485
    %v1518 = vunpack.c.l.b16 %v1486
    %v1519 = vunpack.c.l.b16 %v1487
    %v1520 = vunpack.c.l.b16 %v1488
    %v1521 = vunpack.c.l.b16 %v1489
    %v1522 = vunpack.c.l.b16 %v1490
    %v1523 = vunpack.c.l.b16 %v1491
    %v1524 = vunpack.c.l.b16 %v1492
    %v1525 = vunpack.c.l.b16 %v1493
    %v1526 = vunpack.c.l.b16 %v1494
    %v1527 = vunpack.c.l.b16 %v1495
    %v1528 = vpack.c.b16 %v1513, %v1512
    %v1529 = vpack.c.b16 %v1515, %v1514
    %v1530 = vpack.c.b16 %v1517, %v1516
    %v1531 = vpack.c.b16 %v1519, %v1518
    %v1532 = vpack.c.b16 %v1521, %v1520
    %v1533 = vpack.c.b16 %v1523, %v1522
    %v1534 = vpack.c.b16 %v1525, %v1524
    %v1535 = vpack.c.b16 %v1527, %v1526
    %1544 = vmatprep.subr.bf16.mxu0 0
    %1545 = vmatpush1.bf16.msra.mxu0 %v1528
    %1546 = vmatprep.subr.bf16.mxu0 0
    %1547 = vmatpush1.bf16.msra.mxu0 %v1529
    %1548 = vmatprep.subr.bf16.mxu0 0
    %1549 = vmatpush1.bf16.msra.mxu0 %v1530
    %1550 = vmatprep.subr.bf16.mxu0 0
    %1551 = vmatpush1.bf16.msra.mxu0 %v1531
    %1552 = vmatprep.subr.bf16.mxu0 0
    %1553 = vmatpush1.bf16.msra.mxu0 %v1532
    %1554 = vmatprep.subr.bf16.mxu0 0
    %1555 = vmatpush1.bf16.msra.mxu0 %v1533
    %1556 = vmatprep.subr.bf16.mxu0 0
    %1557 = vmatpush1.bf16.msra.mxu0 %v1534
    %1558 = vmatprep.subr.bf16.mxu0 0
    %1559 = vmatpush1.bf16.msra.mxu0 %v1535
    %1560 = vmatprep.subr.bf16.mxu0 0
    %1561 = vmatpush1.bf16.msra.mxu0 0
    %1562 = vmatprep.subr.bf16.mxu0 0
    %1563 = vmatpush1.bf16.msra.mxu0 0
    %1564 = vmatprep.subr.bf16.mxu0 0
    %1565 = vmatpush1.bf16.msra.mxu0 0
    %1566 = vmatprep.subr.bf16.mxu0 0
    %1567 = vmatpush1.bf16.msra.mxu0 0
    %1568 = vmatprep.subr.bf16.mxu0 0
    %1569 = vmatpush1.bf16.msra.mxu0 0
    %1570 = vmatprep.subr.bf16.mxu0 0
    %1571 = vmatpush1.bf16.msra.mxu0 0
    %1572 = vmatprep.subr.bf16.mxu0 0
    %1573 = vmatpush1.bf16.msra.mxu0 0
    %1574 = vmatprep.subr.bf16.mxu0 0
    %1575 = vmatpush1.bf16.msra.mxu0 0
    %1576 = vmatprep.mubr.bf16.mxu0 0
    %1577 = vmatmul.mubr.bf16.gmra.mrb[0].mxu0 %v1476
    %v1578 = vpop.f32.mrb[0].mxu0
    %v1579 = vadd.f32 0.0, %v1578
    %v1580 = vpop.f32.mrb[0].mxu0
    %v1581 = vpop.f32.mrb[0].mxu0
    %v1582 = vadd.f32 0.0, %v1581
    %v1583 = vpop.f32.mrb[0].mxu0
    %1584 = vmatprep.mubr.bf16.mxu0 0
    %1585 = vmatmul.mubr.bf16.gmra.mrb[0].mxu0 %v1477
    %v1586 = vpop.f32.mrb[0].mxu0
    %v1587 = vadd.f32 0.0, %v1586
    %v1588 = vpop.f32.mrb[0].mxu0
    %v1589 = vpop.f32.mrb[0].mxu0
    %v1590 = vadd.f32 0.0, %v1589
    %v1591 = vpop.f32.mrb[0].mxu0
    %1592 = vmatprep.mubr.bf16.mxu0 0
    %1593 = vmatmul.mubr.bf16.gmra.mrb[0].mxu0 %v1478
    %v1594 = vpop.f32.mrb[0].mxu0
    %v1595 = vadd.f32 0.0, %v1594
    %v1596 = vpop.f32.mrb[0].mxu0
    %v1597 = vpop.f32.mrb[0].mxu0
    %v1598 = vadd.f32 0.0, %v1597
    %v1599 = vpop.f32.mrb[0].mxu0
    %1600 = vmatprep.mubr.bf16.mxu0 0
    %1601 = vmatmul.mubr.bf16.gmra.mrb[0].mxu0 %v1479
    %v1602 = vpop.f32.mrb[0].mxu0
    %v1603 = vadd.f32 0.0, %v1602
    %v1604 = vpop.f32.mrb[0].mxu0
    %v1605 = vpop.f32.mrb[0].mxu0
    %v1606 = vpop.f32.mrb[0].mxu0
    %1607 = vdwg.mxu0
    %v1608 = vld [vmem:[%s4] sm:$0x1]
    %v1609 = vpack.c.bf16 %v1582, %v1579
    %v1610 = vpack.c.bf16 %v1590, %v1587
    %v1611 = vpack.c.bf16 %v1598, %v1595
    %v1612 = vpack.c.bf16 %v1603, %v1603
    %v1613 = vld [vmem:[%s7] sm:$0xff]
    %v1614 = vld [vmem:[%s7 + $0x8] sm:$0xff]
    %v1615 = vld [vmem:[%s7 + $0x10] sm:$0xff]
    %v1616 = vld [vmem:[%s7 + $0x18] sm:$0xff]
    %v1617 = vld [vmem:[%s7 + $0x20] sm:$0xff]
    %v1618 = vld [vmem:[%s7 + $0x28] sm:$0xff]
    %v1619 = vld [vmem:[%s7 + $0x30] sm:$0xff]
    %v1620 = vmul.f32 %v1579, %v1613
    %v1621 = vmul.f32 %v1582, %v1614
    %v1622 = vmul.f32 %v1587, %v1615
    %v1623 = vmul.f32 %v1590, %v1616
    %v1624 = vmul.f32 %v1595, %v1617
    %v1625 = vmul.f32 %v1598, %v1618
    %v1626 = vmul.f32 %v1603, %v1619
    %vm1627 = vcmask 15360
    %v1628 = vsel %vm1627, %v1620, 0.0
    %v1629 = vsel %vm1627, %v1621, 0.0
    %v1630 = vadd.f32 %v1628, %v1629
    %v1631 = vsel %vm1627, %v1622, 0.0
    %v1632 = vadd.f32 %v1630, %v1631
    %v1633 = vsel %vm1627, %v1623, 0.0
    %v1634 = vadd.f32 %v1632, %v1633
    %v1635 = vsel %vm1627, %v1624, 0.0
    %v1636 = vadd.f32 %v1634, %v1635
    %v1637 = vsel %vm1627, %v1625, 0.0
    %v1638 = vadd.f32 %v1636, %v1637
    %v1639 = vsel %vm1627, %v1626, 0.0
    %v1640 = vadd.f32 %v1638, %v1639
    %v1641 = vrot.slane %v1640, 4
    %v1642 = vadd.f32 %v1640, %v1641
    %v1643 = vrot.slane %v1642, 2
    %v1644 = vadd.f32 %v1642, %v1643
    %v1645 = vrot.slane %v1644, 1
    %v1646 = vadd.f32 %v1644, %v1645
    %v1647 = vld [vmem:[%s5] sm:$0x3]
    %1649 = vset.pattern.permute.xlu0 0
    %1650 = vperm.xlu0 %1649, %v1647
    %v1651 = vpop.permute.xlu0 %1650
    %v1654 = vsel %vm783, %v1608, 0
    %v1657 = vsel %vm110, %v1612, 0
    %1659 = vmatprep.subr.bf16.mxu0 0
    %1660 = vmatpush1.bf16.msra.mxu0 %v1609
    %1661 = vmatprep.subr.bf16.mxu0 0
    %1662 = vmatpush1.bf16.msra.mxu0 %v1610
    %1663 = vmatprep.subr.bf16.mxu0 0
    %1664 = vmatpush1.bf16.msra.mxu0 %v1611
    %1665 = vmatprep.subr.bf16.mxu0 0
    %1666 = vmatpush1.bf16.msra.mxu0 %v1657
    %1667 = vmatprep.subr.bf16.mxu0 0
    %1668 = vmatpush1.bf16.msra.mxu0 0
    %1669 = vmatprep.subr.bf16.mxu0 0
    %1670 = vmatpush1.bf16.msra.mxu0 0
    %1671 = vmatprep.subr.bf16.mxu0 0
    %1672 = vmatpush1.bf16.msra.mxu0 0
    %1673 = vmatprep.subr.bf16.mxu0 0
    %1674 = vmatpush1.bf16.msra.mxu0 0
    %1675 = vmatprep.subr.bf16.mxu0 0
    %1676 = vmatpush1.bf16.msra.mxu0 0
    %1677 = vmatprep.subr.bf16.mxu0 0
    %1678 = vmatpush1.bf16.msra.mxu0 0
    %1679 = vmatprep.subr.bf16.mxu0 0
    %1680 = vmatpush1.bf16.msra.mxu0 0
    %1681 = vmatprep.subr.bf16.mxu0 0
    %1682 = vmatpush1.bf16.msra.mxu0 0
    %1683 = vmatprep.subr.bf16.mxu0 0
    %1684 = vmatpush1.bf16.msra.mxu0 0
    %1685 = vmatprep.subr.bf16.mxu0 0
    %1686 = vmatpush1.bf16.msra.mxu0 0
    %1687 = vmatprep.subr.bf16.mxu0 0
    %1688 = vmatpush1.bf16.msra.mxu0 0
    %1689 = vmatprep.subr.bf16.mxu0 0
    %1690 = vmatpush1.bf16.msra.mxu0 0
    %1691 = vmatprep.mubr.bf16.mxu0 0
    %1692 = vmatmul.mubr.bf16.gmra.mrb[0].mxu0 %v1654
    %v1693 = vpop.f32.mrb[0].mxu0
    %v1694 = vadd.f32 %v1651, %v1693
    %v1695 = vpop.f32.mrb[0].mxu0
    %v1696 = vpop.f32.mrb[0].mxu0
    %v1697 = vpop.f32.mrb[0].mxu0
    %1698 = vdwg.mxu0
    %v1699 = vadd.f32 %v1694, %v1646
    %v1700 = vlaneseq
    %v1701 = vshrl.u32 %v1700, 7
    %vm1702 = vcmp.eq.s32.totalorder %v1701, 0
    %v1703 = vsub.f32 0.0, %v1699
    %v1704 = vmul.f32 %v1703, 1.442695
    %v1705 = vpow.pop %v1704
    %v1706 = vadd.f32 %v1705, 1.0
    %v1707 = vrcp.pop %v1706
    %v1708 = vmul.f32 1.0, %v1707
    %v1709 = vsel %vm1702, %v1699, %v1708
    %vm1710 = vcmask 9216
    %1711 = vst.msk [vmem:[#allocation4] sm:$0x3] %vm1710, %v1709
    // Predicated region
    $region38: #{tpu_custom_call.1} parent=1 // pred_check
      _
    $region39: #{tpu_custom_call.1} parent=1 // pred_check_branch
      %1713 = sbr.rel (0) target = $region41
    $region40: #{tpu_custom_call.1} parent=1 // pred_region
      %s1715 = ssub.s32 32, 32
      %1716 = vsyncadd [#allocation5], %s1715
      %s1718 = sshll.u32 [#allocation4], 4
      %s1719 = int_to_ptr.vmem [resolvable:$true] %s1718
      %1721 = dma.vmem_to_hbm [thread:$0]  %s1719, 32, %s9, [#allocation5]
    $region41: #{tpu_custom_call.1} parent=1 // pred_fallthru
      _
    // Predicated region
    $region42: #{tpu_custom_call.1} parent=1 // pred_check
      _
    $region43: #{tpu_custom_call.1} parent=1 // pred_check_branch
      %1723 = sbr.rel (0) target = $region45
    $region44: #{tpu_custom_call.1} parent=1 // pred_region
      %1724 = dma.done [#allocation5], 32
    $region45: #{tpu_custom_call.1} parent=1 // pred_fallthru
      _
    %1725 = vsyncpa [#allocation5], 1

</llo_original>
